<compile_context>
chip_gen: v6e
topology: v6e:2x2x1
jax: 0.10.0
libtpu: 0.0.40
codegen_flags: <defaults>
</compile_context>

<pallas_src>
import functools

import jax
import jax.numpy as jnp
import numpy as np
from jax.experimental import pallas as pl
from jax.experimental.pallas import tpu as pltpu

_VMEM_LIMIT = 48 * 1024 * 1024  # safe on v5e/v6e (128 MiB phys) and v7x (64 MiB phys)


# ------------------------------- tile helpers --------------------------------

def _pick_row_tile(M, cap=256):
    for t in (cap, 128, 64, 32, 16, 8):
        if t <= cap and M % t == 0 and M >= t:
            return t
    return M


def _pick_col_tile(N, cap=512):
    for t in (cap, 256, 128):
        if N % t == 0 and N > t:
            return t
    return N


# ----------------------------- Pallas kernels ---------------------------------

def _linear_kernel(x_ref, w_ref, b_ref, *rest, activation, fuse_ln, ln_eps):
    if fuse_ln:
        res_ref, g_ref, beta_ref, o_ref = rest
    else:
        (o_ref,) = rest
    # bf16 x bf16 -> f32 accumulate on the MXU.
    acc = jnp.dot(x_ref[...], w_ref[...], preferred_element_type=jnp.float32)
    acc = acc + b_ref[...]
    if activation == "gelu":
        # TODO(synk): HF RoBERTa uses exact erf-GELU; tanh approximation used for Mosaic-friendly lowering.
        acc = 0.5 * acc * (1.0 + jnp.tanh(0.7978845608028654 * (acc + 0.044715 * acc * acc * acc)))
    elif activation == "tanh":
        acc = jnp.tanh(acc)
    if fuse_ln:
        y = acc + res_ref[...].astype(jnp.float32)
        mean = jnp.mean(y, axis=-1, keepdims=True)
        var = jnp.mean((y - mean) ** 2, axis=-1, keepdims=True)
        y = (y - mean) * jax.lax.rsqrt(var + ln_eps)
        acc = y * g_ref[...] + beta_ref[...]
    o_ref[...] = acc.astype(o_ref.dtype)


def linear(x, w, b, *, activation=None, residual=None, ln_gamma=None, ln_beta=None,
           ln_eps=1e-5, out_dtype=jnp.bfloat16):
    """y = act(x @ w + b) with optional fused residual-add + LayerNorm epilogue.

    x: (M, K) bf16, w: (K, N) bf16, b/ln params: f32. Returns (M, N) out_dtype.
    """
    M, K = x.shape
    N = w.shape[1]
    fuse_ln = ln_gamma is not None

    bm = _pick_row_tile(M)
    bn = N if fuse_ln else _pick_col_tile(N)   # LN needs the full row in one block
    grid = (M // bm, N // bn)

    in_specs = [
        pl.BlockSpec((bm, K), lambda i, j: (i, 0)),
        pl.BlockSpec((K, bn), lambda i, j: (0, j)),
        pl.BlockSpec((1, bn), lambda i, j: (0, j)),
    ]
    args = [x, w, b.reshape(1, N)]
    if fuse_ln:
        in_specs += [
            pl.BlockSpec((bm, N), lambda i, j: (i, 0)),
            pl.BlockSpec((1, N), lambda i, j: (0, 0)),
            pl.BlockSpec((1, N), lambda i, j: (0, 0)),
        ]
        args += [residual, ln_gamma.reshape(1, N), ln_beta.reshape(1, N)]

    cost = pl.CostEstimate(
        flops=2 * M * K * N,
        transcendentals=M * N if (activation is not None) else 0,
        bytes_accessed=(x.size * x.dtype.itemsize
                        + w.size * w.dtype.itemsize
                        + b.size * 4
                        + M * N * np.dtype(out_dtype).itemsize),
    )

    return pl.pallas_call(
        functools.partial(_linear_kernel, activation=activation, fuse_ln=fuse_ln, ln_eps=ln_eps),
        out_shape=jax.ShapeDtypeStruct((M, N), out_dtype),
        grid=grid,
        in_specs=in_specs,
        out_specs=pl.BlockSpec((bm, bn), lambda i, j: (i, j)),
        compiler_params=pltpu.CompilerParams(
            dimension_semantics=("parallel", "parallel"),
            vmem_limit_bytes=_VMEM_LIMIT),
        cost_estimate=cost,
    )(*args)


def _layernorm_kernel(x_ref, g_ref, b_ref, o_ref, *, eps):
    x = x_ref[...].astype(jnp.float32)
    mean = jnp.mean(x, axis=-1, keepdims=True)
    var = jnp.mean((x - mean) ** 2, axis=-1, keepdims=True)
    y = (x - mean) * jax.lax.rsqrt(var + eps)
    o_ref[...] = (y * g_ref[...] + b_ref[...]).astype(o_ref.dtype)


def layernorm(x, gamma, beta, eps=1e-5, out_dtype=jnp.bfloat16):
    """Residual-free LayerNorm over the last axis. x: (M, H)."""
    M, H = x.shape
    bm = _pick_row_tile(M)
    return pl.pallas_call(
        functools.partial(_layernorm_kernel, eps=eps),
        out_shape=jax.ShapeDtypeStruct((M, H), out_dtype),
        grid=(M // bm,),
        in_specs=[
            pl.BlockSpec((bm, H), lambda i: (i, 0)),
            pl.BlockSpec((1, H), lambda i: (0, 0)),
            pl.BlockSpec((1, H), lambda i: (0, 0)),
        ],
        out_specs=pl.BlockSpec((bm, H), lambda i: (i, 0)),
        compiler_params=pltpu.CompilerParams(
            dimension_semantics=("parallel",),
            vmem_limit_bytes=_VMEM_LIMIT),
    )(x, gamma.reshape(1, H), beta.reshape(1, H))


def _attention_kernel(qkv_ref, bias_ref, o_ref, *, n_heads, head_dim, scale):
    """All heads of one batch element per grid step; output written as a lane-dense (S, H) block."""
    H = n_heads * head_dim
    bias = bias_ref[0]                       # (1, S) additive mask bias, f32
    outs = []
    for h in range(n_heads):                 # static unrolled loop over heads
        q = qkv_ref[0, :, h * head_dim:(h + 1) * head_dim]            # (S, Dh) bf16
        k = qkv_ref[0, :, H + h * head_dim:H + (h + 1) * head_dim]    # (S, Dh) bf16
        v = qkv_ref[0, :, 2 * H + h * head_dim:2 * H + (h + 1) * head_dim]
        s = jax.lax.dot_general(q, k, (((1,), (1,)), ((), ())),
                                preferred_element_type=jnp.float32) * scale + bias
        s = s - jnp.max(s, axis=-1, keepdims=True)
        p = jnp.exp(s)
        # EUP reciprocal in its own bundle slot -> essentially free vs. a real divide.
        p = p * pl.reciprocal(jnp.sum(p, axis=-1, keepdims=True), approx=True)
        outs.append(jnp.dot(p.astype(v.dtype), v, preferred_element_type=jnp.float32))
    o_ref[0] = jnp.concatenate(outs, axis=-1).astype(o_ref.dtype)


def multi_head_attention(qkv, mask_bias, *, n_heads, head_dim, scale):
    """qkv: (B, S, 3H) bf16 (packed [Q|K|V] column blocks); mask_bias: (B, 1, S) f32 additive.

    Returns (B, S, H) bf16 with heads already merged on the lane axis (no transpose needed).
    """
    B, S, threeH = qkv.shape
    H = n_heads * head_dim
    cost = pl.CostEstimate(
        flops=4 * B * n_heads * S * S * head_dim,
        transcendentals=B * n_heads * S * S,
        bytes_accessed=(qkv.size * qkv.dtype.itemsize
                        + mask_bias.size * 4
                        + B * S * H * 2),
    )
    return pl.pallas_call(
        functools.partial(_attention_kernel, n_heads=n_heads, head_dim=head_dim, scale=scale),
        out_shape=jax.ShapeDtypeStruct((B, S, H), jnp.bfloat16),
        grid=(B,),
        in_specs=[
            pl.BlockSpec((1, S, threeH), lambda b: (b, 0, 0)),
            pl.BlockSpec((1, 1, S), lambda b: (b, 0, 0)),
        ],
        out_specs=pl.BlockSpec((1, S, H), lambda b: (b, 0, 0)),
        compiler_params=pltpu.CompilerParams(
            dimension_semantics=("parallel",),
            vmem_limit_bytes=_VMEM_LIMIT),
        cost_estimate=cost,
    )(qkv, mask_bias)


def _pooler_fc_kernel(cls_ref, pw_ref, pb_ref, fw_ref, fb_ref, o_ref):
    """Fused classification head: logits = (tanh(cls @ Wp + bp)) @ Wfc + bfc.

    Dropout(p=0.1) between pooler and fc is identity at inference.
    """
    pooled = jnp.dot(cls_ref[...], pw_ref[...], preferred_element_type=jnp.float32) + pb_ref[...]
    pooled = jnp.tanh(pooled)
    logits = jnp.dot(pooled.astype(fw_ref.dtype), fw_ref[...],
                     preferred_element_type=jnp.float32) + fb_ref[...]
    o_ref[...] = logits


def pooler_fc_head(cls, pooler_w, pooler_b, fc_w, fc_b):
    """cls: (B, H) bf16. Returns (B, num_classes) f32 logits in a single kernel."""
    B, H = cls.shape
    C = fc_w.shape[1]
    vmem = pl.BlockSpec(memory_space=pltpu.MemorySpace.VMEM)
    return pl.pallas_call(
        _pooler_fc_kernel,
        out_shape=jax.ShapeDtypeStruct((B, C), jnp.float32),
        in_specs=[vmem, vmem, vmem, vmem, vmem],
        out_specs=vmem,
        compiler_params=pltpu.CompilerParams(vmem_limit_bytes=_VMEM_LIMIT),
    )(cls, pooler_w, pooler_b.reshape(1, H), fc_w, fc_b.reshape(1, C))


# --------------------------- Parameter construction ---------------------------

def init_params(key, *, vocab, max_pos, hidden, n_layers, n_heads, inter, num_classes):
    def nrm_bf16(k, shape, scale=0.02):
        return (scale * jax.random.normal(k, shape, dtype=jnp.float32)).astype(jnp.bfloat16)

    keys = iter(jax.random.split(key, 8 + n_layers * 4))
    p = {
        "word_emb": 0.02 * jax.random.normal(next(keys), (vocab, hidden), dtype=jnp.float32),
        "pos_emb": 0.02 * jax.random.normal(next(keys), (max_pos, hidden), dtype=jnp.float32),
        "type_emb": 0.02 * jax.random.normal(next(keys), (1, hidden), dtype=jnp.float32),
        "emb_ln_g": jnp.ones((hidden,), jnp.float32),
        "emb_ln_b": jnp.zeros((hidden,), jnp.float32),
        "layers": [],
        "pooler_w": nrm_bf16(next(keys), (hidden, hidden)),
        "pooler_b": jnp.zeros((hidden,), jnp.float32),
        "fc_w": nrm_bf16(next(keys), (hidden, num_classes)),
        "fc_b": jnp.zeros((num_classes,), jnp.float32),
    }
    for _ in range(n_layers):
        p["layers"].append({
            # fused Q/K/V projection: (H, 3H) = [wq | wk | wv]
            "wqkv": nrm_bf16(next(keys), (hidden, 3 * hidden)),
            "bqkv": jnp.zeros((3 * hidden,), jnp.float32),
            "wo": nrm_bf16(next(keys), (hidden, hidden)), "bo": jnp.zeros((hidden,), jnp.float32),
            "ln1_g": jnp.ones((hidden,), jnp.float32), "ln1_b": jnp.zeros((hidden,), jnp.float32),
            "w1": nrm_bf16(next(keys), (hidden, inter)), "b1": jnp.zeros((inter,), jnp.float32),
            "w2": nrm_bf16(next(keys), (inter, hidden)), "b2": jnp.zeros((hidden,), jnp.float32),
            "ln2_g": jnp.ones((hidden,), jnp.float32), "ln2_b": jnp.zeros((hidden,), jnp.float32),
        })
    return p


# -------------------------------- Forward pass ---------------------------------

def roberta_classifier_forward(params, input_ids, attention_mask, *, n_heads):
    B, S = input_ids.shape
    H = params["word_emb"].shape[1]
    Dh = H // n_heads
    pad_idx = 1  # RoBERTa position padding_idx

    # --- embeddings (gathers = glue) ---
    mask_i = attention_mask.astype(jnp.int32)
    position_ids = jnp.cumsum(mask_i, axis=1) * mask_i + pad_idx
    emb = (params["word_emb"][input_ids]
           + params["pos_emb"][position_ids]
           + params["type_emb"][jnp.zeros_like(input_ids)]).astype(jnp.float32)
    x = layernorm(emb.reshape(B * S, H), params["emb_ln_g"], params["emb_ln_b"], eps=1e-5)  # bf16

    # additive attention-mask bias (B, 1, S); kept in f32 so exp() stays well-behaved
    mask_bias = (1.0 - attention_mask.astype(jnp.float32))[:, None, :] * -1e9
    scale = 1.0 / (Dh ** 0.5)

    # --- transformer layers ---
    for lp in params["layers"]:
        # fused QKV projection -> (B*S, 3H), consumed directly by the attention kernel
        qkv = linear(x, lp["wqkv"], lp["bqkv"])
        ctx = multi_head_attention(qkv.reshape(B, S, 3 * H), mask_bias,
                                   n_heads=n_heads, head_dim=Dh, scale=scale)
        ctx = ctx.reshape(B * S, H)

        # attention output projection + residual + LayerNorm fused in one kernel
        x = linear(ctx, lp["wo"], lp["bo"],
                   residual=x, ln_gamma=lp["ln1_g"], ln_beta=lp["ln1_b"], ln_eps=1e-5)

        # FFN: bias+GELU fused; second matmul fuses residual + LayerNorm
        ff = linear(x, lp["w1"], lp["b1"], activation="gelu")
        x = linear(ff, lp["w2"], lp["b2"],
                   residual=x, ln_gamma=lp["ln2_g"], ln_beta=lp["ln2_b"], ln_eps=1e-5)

    # --- pooler (tanh dense on CLS) + dropout(identity) + classifier fc, fused ---
    hidden = x.reshape(B, S, H)
    cls = hidden[:, 0, :]                                                   # (B, H) bf16
    logits = pooler_fc_head(cls, params["pooler_w"], params["pooler_b"],
                            params["fc_w"], params["fc_b"])
    return logits


# ------------------------------------ Main --------------------------------------

if __name__ == "__main__":
    # Small, RoBERTa-shaped config: batch=2, seq=8, hidden=32, 2 layers, 2 heads,
    # intermediate=64, vocab=50, num_classes=2.
    B, S, H, N_LAYERS, N_HEADS, INTER, VOCAB, MAX_POS, NUM_CLASSES = 2, 8, 32, 2, 2, 64, 50, 64, 2

    key = jax.random.PRNGKey(0)
    k_params, k_ids = jax.random.split(key)
    params = init_params(k_params, vocab=VOCAB, max_pos=MAX_POS, hidden=H,
                         n_layers=N_LAYERS, n_heads=N_HEADS, inter=INTER,
                         num_classes=NUM_CLASSES)

    input_ids = jax.random.randint(k_ids, (B, S), 2, VOCAB, dtype=jnp.int32)
    # last two tokens of batch element 1 are padding
    attention_mask = jnp.array([[1, 1, 1, 1, 1, 1, 1, 1],
                                [1, 1, 1, 1, 1, 1, 0, 0]], dtype=jnp.int32)

    fwd = jax.jit(functools.partial(roberta_classifier_forward, n_heads=N_HEADS))
    logits = fwd(params, input_ids, attention_mask)
    logits = jax.block_until_ready(logits)
    assert logits.shape == (B, NUM_CLASSES) and logits.dtype == jnp.float32
    print("KERNEL_OK")
</pallas_src>

<mosaic_0001>
module attributes {stable_mosaic.version = 11 : i64} {
  func.func @_layernorm_kernel(%arg0: i32, %arg1: memref<16x32xf32, #tpu.memory_space<vmem>>, %arg2: memref<1x32xf32, #tpu.memory_space<vmem>>, %arg3: memref<1x32xf32, #tpu.memory_space<vmem>>, %arg4: memref<16x32xbf16, #tpu.memory_space<vmem>>) attributes {dimension_semantics = [#tpu.dimension_semantics<parallel>], iteration_bounds = array<i64: 1>, scalar_prefetch = 0 : i64, scratch_operands = 0 : i64, tpu.core_type = #tpu.core_type<tc>, window_params = [{transform_indices = @transform_0, window_bounds = array<i64: 16, 32>}, {pipeline_mode = #tpu.pipeline_mode<synchronous>, transform_indices = @transform_1, window_bounds = array<i64: 1, 32>}, {pipeline_mode = #tpu.pipeline_mode<synchronous>, transform_indices = @transform_2, window_bounds = array<i64: 1, 32>}, {transform_indices = @transform_3, window_bounds = array<i64: 16, 32>}]} {
    %c0 = arith.constant 0 : index
    %c0_0 = arith.constant 0 : index
    %0 = vector.load %arg1[%c0, %c0_0] : memref<16x32xf32, #tpu.memory_space<vmem>>, vector<16x32xf32>
    %cst = arith.constant dense<0.000000e+00> : vector<16xf32>
    %1 = vector.multi_reduction <add>, %0, %cst [1] : vector<16x32xf32> to vector<16xf32>
    %2 = vector.shape_cast %1 : vector<16xf32> to vector<16x1xf32>
    %cst_1 = arith.constant 3.200000e+01 : f32
    %3 = vector.broadcast %cst_1 : f32 to vector<16x1xf32>
    %4 = arith.divf %2, %3 : vector<16x1xf32>
    %5 = vector.broadcast %4 : vector<16x1xf32> to vector<16x32xf32>
    %6 = arith.subf %0, %5 : vector<16x32xf32>
    %7 = arith.mulf %6, %6 : vector<16x32xf32>
    %cst_2 = arith.constant dense<0.000000e+00> : vector<16xf32>
    %8 = vector.multi_reduction <add>, %7, %cst_2 [1] : vector<16x32xf32> to vector<16xf32>
    %9 = vector.shape_cast %8 : vector<16xf32> to vector<16x1xf32>
    %cst_3 = arith.constant 3.200000e+01 : f32
    %10 = vector.broadcast %cst_3 : f32 to vector<16x1xf32>
    %11 = arith.divf %9, %10 : vector<16x1xf32>
    %12 = vector.broadcast %4 : vector<16x1xf32> to vector<16x32xf32>
    %13 = arith.subf %0, %12 : vector<16x32xf32>
    %cst_4 = arith.constant 9.99999974E-6 : f32
    %14 = vector.broadcast %cst_4 : f32 to vector<16x1xf32>
    %15 = arith.addf %11, %14 : vector<16x1xf32>
    %16 = math.rsqrt %15 : vector<16x1xf32>
    %17 = vector.broadcast %16 : vector<16x1xf32> to vector<16x32xf32>
    %18 = arith.mulf %13, %17 : vector<16x32xf32>
    %c0_5 = arith.constant 0 : index
    %c0_6 = arith.constant 0 : index
    %19 = vector.load %arg2[%c0_5, %c0_6] : memref<1x32xf32, #tpu.memory_space<vmem>>, vector<1x32xf32>
    %20 = vector.broadcast %19 : vector<1x32xf32> to vector<16x32xf32>
    %21 = arith.mulf %18, %20 : vector<16x32xf32>
    %c0_7 = arith.constant 0 : index
    %c0_8 = arith.constant 0 : index
    %22 = vector.load %arg3[%c0_7, %c0_8] : memref<1x32xf32, #tpu.memory_space<vmem>>, vector<1x32xf32>
    %23 = vector.broadcast %22 : vector<1x32xf32> to vector<16x32xf32>
    %24 = arith.addf %21, %23 : vector<16x32xf32>
    %25 = arith.truncf %24 : vector<16x32xf32> to vector<16x32xbf16>
    %c0_9 = arith.constant 0 : index
    %c0_10 = arith.constant 0 : index
    %26 = vector.load %arg4[%c0_9, %c0_10] : memref<16x32xbf16, #tpu.memory_space<vmem>>, vector<16x32xbf16>
    tpu.vector_store %arg4[%c0_9, %c0_10], %25 {strides = array<i32>} : memref<16x32xbf16, #tpu.memory_space<vmem>>, vector<16x32xbf16>,
    return
  }
  func.func @transform_0(%arg0: i32) -> (i32, i32) {
    %c0_i32 = arith.constant 0 : i32
    %c0_i32_0 = arith.constant 0 : i32
    return %arg0, %c0_i32 : i32, i32
  }
  func.func @transform_1(%arg0: i32) -> (i32, i32) {
    %c0_i32 = arith.constant 0 : i32
    %c0_i32_0 = arith.constant 0 : i32
    %c0_i32_1 = arith.constant 0 : i32
    return %c0_i32, %c0_i32_0 : i32, i32
  }
  func.func @transform_2(%arg0: i32) -> (i32, i32) {
    %c0_i32 = arith.constant 0 : i32
    %c0_i32_0 = arith.constant 0 : i32
    %c0_i32_1 = arith.constant 0 : i32
    return %c0_i32, %c0_i32_0 : i32, i32
  }
  func.func @transform_3(%arg0: i32) -> (i32, i32) {
    %c0_i32 = arith.constant 0 : i32
    %c0_i32_0 = arith.constant 0 : i32
    return %arg0, %c0_i32 : i32, i32
  }
}

module attributes {stable_mosaic.version = 11 : i64} {
  func.func @_linear_kernel(%arg0: i32, %arg1: i32, %arg2: memref<16x32xbf16, #tpu.memory_space<vmem>>, %arg3: memref<32x96xbf16, #tpu.memory_space<vmem>>, %arg4: memref<1x96xf32, #tpu.memory_space<vmem>>, %arg5: memref<16x96xbf16, #tpu.memory_space<vmem>>) attributes {dimension_semantics = [#tpu.dimension_semantics<parallel>, #tpu.dimension_semantics<parallel>], iteration_bounds = array<i64: 1, 1>, scalar_prefetch = 0 : i64, scratch_operands = 0 : i64, tpu.core_type = #tpu.core_type<tc>, window_params = [{transform_indices = @transform_0, window_bounds = array<i64: 16, 32>}, {transform_indices = @transform_1, window_bounds = array<i64: 32, 96>}, {transform_indices = @transform_2, window_bounds = array<i64: 1, 96>}, {transform_indices = @transform_3, window_bounds = array<i64: 16, 96>}]} {
    %c0 = arith.constant 0 : index
    %c0_0 = arith.constant 0 : index
    %0 = vector.load %arg2[%c0, %c0_0] : memref<16x32xbf16, #tpu.memory_space<vmem>>, vector<16x32xbf16>
    %c0_1 = arith.constant 0 : index
    %c0_2 = arith.constant 0 : index
    %1 = vector.load %arg3[%c0_1, %c0_2] : memref<32x96xbf16, #tpu.memory_space<vmem>>, vector<32x96xbf16>
    %cst = arith.constant dense<0.000000e+00> : vector<16x96xf32>
    %2 = tpu.matmul %0, %1, %cst {dimension_numbers = #tpu.dot_dimension_numbers<[1], [0], [0], [1], [0, 0, 1, 1], [], []>} : vector<16x32xbf16>, vector<32x96xbf16>, vector<16x96xf32> -> vector<16x96xf32>
    %c0_3 = arith.constant 0 : index
    %c0_4 = arith.constant 0 : index
    %3 = vector.load %arg4[%c0_3, %c0_4] : memref<1x96xf32, #tpu.memory_space<vmem>>, vector<1x96xf32>
    %4 = vector.broadcast %3 : vector<1x96xf32> to vector<16x96xf32>
    %5 = arith.addf %2, %4 : vector<16x96xf32>
    %6 = arith.truncf %5 : vector<16x96xf32> to vector<16x96xbf16>
    %c0_5 = arith.constant 0 : index
    %c0_6 = arith.constant 0 : index
    %7 = vector.load %arg5[%c0_5, %c0_6] : memref<16x96xbf16, #tpu.memory_space<vmem>>, vector<16x96xbf16>
    tpu.vector_store %arg5[%c0_5, %c0_6], %6 {strides = array<i32>} : memref<16x96xbf16, #tpu.memory_space<vmem>>, vector<16x96xbf16>,
    return
  }
  func.func @transform_0(%arg0: i32, %arg1: i32) -> (i32, i32) {
    %c0_i32 = arith.constant 0 : i32
    %c0_i32_0 = arith.constant 0 : i32
    return %arg0, %c0_i32 : i32, i32
  }
  func.func @transform_1(%arg0: i32, %arg1: i32) -> (i32, i32) {
    %c0_i32 = arith.constant 0 : i32
    %c0_i32_0 = arith.constant 0 : i32
    return %c0_i32, %arg1 : i32, i32
  }
  func.func @transform_2(%arg0: i32, %arg1: i32) -> (i32, i32) {
    %c0_i32 = arith.constant 0 : i32
    %c0_i32_0 = arith.constant 0 : i32
    return %c0_i32, %arg1 : i32, i32
  }
  func.func @transform_3(%arg0: i32, %arg1: i32) -> (i32, i32) {
    %c0_i32 = arith.constant 0 : i32
    return %arg0, %arg1 : i32, i32
  }
}

module attributes {stable_mosaic.version = 11 : i64} {
  func.func @_attention_kernel(%arg0: i32, %arg1: memref<1x8x96xbf16, #tpu.memory_space<vmem>>, %arg2: memref<1x1x8xf32, #tpu.memory_space<vmem>>, %arg3: memref<1x8x32xbf16, #tpu.memory_space<vmem>>) attributes {dimension_semantics = [#tpu.dimension_semantics<parallel>], iteration_bounds = array<i64: 2>, scalar_prefetch = 0 : i64, scratch_operands = 0 : i64, tpu.core_type = #tpu.core_type<tc>, window_params = [{transform_indices = @transform_0, window_bounds = array<i64: 1, 8, 96>}, {transform_indices = @transform_1, window_bounds = array<i64: 1, 1, 8>}, {transform_indices = @transform_2, window_bounds = array<i64: 1, 8, 32>}]} {
    %c0 = arith.constant 0 : index
    %c0_0 = arith.constant 0 : index
    %c0_1 = arith.constant 0 : index
    %0 = vector.load %arg2[%c0, %c0_0, %c0_1] : memref<1x1x8xf32, #tpu.memory_space<vmem>>, vector<1x1x8xf32>
    %1 = vector.shape_cast %0 : vector<1x1x8xf32> to vector<1x8xf32>
    %c0_2 = arith.constant 0 : index
    %c0_3 = arith.constant 0 : index
    %c0_4 = arith.constant 0 : index
    %2 = vector.load %arg1[%c0_2, %c0_3, %c0_4] : memref<1x8x96xbf16, #tpu.memory_space<vmem>>, vector<1x8x16xbf16>
    %3 = vector.shape_cast %2 : vector<1x8x16xbf16> to vector<8x16xbf16>
    %c0_5 = arith.constant 0 : index
    %c0_6 = arith.constant 0 : index
    %c32 = arith.constant 32 : index
    %4 = vector.load %arg1[%c0_5, %c0_6, %c32] : memref<1x8x96xbf16, #tpu.memory_space<vmem>>, vector<1x8x16xbf16>
    %5 = vector.shape_cast %4 : vector<1x8x16xbf16> to vector<8x16xbf16>
    %c0_7 = arith.constant 0 : index
    %c0_8 = arith.constant 0 : index
    %c64 = arith.constant 64 : index
    %6 = vector.load %arg1[%c0_7, %c0_8, %c64] : memref<1x8x96xbf16, #tpu.memory_space<vmem>>, vector<1x8x16xbf16>
    %7 = vector.shape_cast %6 : vector<1x8x16xbf16> to vector<8x16xbf16>
    %cst = arith.constant dense<0.000000e+00> : vector<8x8xf32>
    %8 = tpu.matmul %3, %5, %cst {dimension_numbers = #tpu.dot_dimension_numbers<[1], [1], [0], [0], [0, 0, 1, 0], [], []>} : vector<8x16xbf16>, vector<8x16xbf16>, vector<8x8xf32> -> vector<8x8xf32>
    %cst_9 = arith.constant 2.500000e-01 : f32
    %9 = vector.broadcast %cst_9 : f32 to vector<8x8xf32>
    %10 = arith.mulf %8, %9 : vector<8x8xf32>
    %11 = vector.broadcast %1 : vector<1x8xf32> to vector<8x8xf32>
    %12 = arith.addf %10, %11 : vector<8x8xf32>
    %cst_10 = arith.constant dense<0xFF800000> : vector<8xf32>
    %13 = vector.multi_reduction <maximumf>, %12, %cst_10 [1] : vector<8x8xf32> to vector<8xf32>
    %14 = vector.shape_cast %13 : vector<8xf32> to vector<8x1xf32>
    %15 = vector.broadcast %14 : vector<8x1xf32> to vector<8x8xf32>
    %16 = arith.subf %12, %15 : vector<8x8xf32>
    %17 = math.exp %16 : vector<8x8xf32>
    %cst_11 = arith.constant dense<0.000000e+00> : vector<8xf32>
    %18 = vector.multi_reduction <add>, %17, %cst_11 [1] : vector<8x8xf32> to vector<8xf32>
    %19 = vector.shape_cast %18 : vector<8xf32> to vector<8x1xf32>
    %20 = tpu.reciprocal %19 {approx = true} : vector<8x1xf32> -> vector<8x1xf32>
    %21 = vector.broadcast %20 : vector<8x1xf32> to vector<8x8xf32>
    %22 = arith.mulf %17, %21 : vector<8x8xf32>
    %23 = arith.truncf %22 : vector<8x8xf32> to vector<8x8xbf16>
    %cst_12 = arith.constant dense<0.000000e+00> : vector<8x16xf32>
    %24 = tpu.matmul %23, %7, %cst_12 {dimension_numbers = #tpu.dot_dimension_numbers<[1], [0], [0], [1], [0, 0, 1, 1], [], []>} : vector<8x8xbf16>, vector<8x16xbf16>, vector<8x16xf32> -> vector<8x16xf32>
    %c0_13 = arith.constant 0 : index
    %c0_14 = arith.constant 0 : index
    %c16 = arith.constant 16 : index
    %25 = vector.load %arg1[%c0_13, %c0_14, %c16] : memref<1x8x96xbf16, #tpu.memory_space<vmem>>, vector<1x8x16xbf16>
    %26 = vector.shape_cast %25 : vector<1x8x16xbf16> to vector<8x16xbf16>
    %c0_15 = arith.constant 0 : index
    %c0_16 = arith.constant 0 : index
    %c48 = arith.constant 48 : index
    %27 = vector.load %arg1[%c0_15, %c0_16, %c48] : memref<1x8x96xbf16, #tpu.memory_space<vmem>>, vector<1x8x16xbf16>
    %28 = vector.shape_cast %27 : vector<1x8x16xbf16> to vector<8x16xbf16>
    %c0_17 = arith.constant 0 : index
    %c0_18 = arith.constant 0 : index
    %c80 = arith.constant 80 : index
    %29 = vector.load %arg1[%c0_17, %c0_18, %c80] : memref<1x8x96xbf16, #tpu.memory_space<vmem>>, vector<1x8x16xbf16>
    %30 = vector.shape_cast %29 : vector<1x8x16xbf16> to vector<8x16xbf16>
    %cst_19 = arith.constant dense<0.000000e+00> : vector<8x8xf32>
    %31 = tpu.matmul %26, %28, %cst_19 {dimension_numbers = #tpu.dot_dimension_numbers<[1], [1], [0], [0], [0, 0, 1, 0], [], []>} : vector<8x16xbf16>, vector<8x16xbf16>, vector<8x8xf32> -> vector<8x8xf32>
    %cst_20 = arith.constant 2.500000e-01 : f32
    %32 = vector.broadcast %cst_20 : f32 to vector<8x8xf32>
    %33 = arith.mulf %31, %32 : vector<8x8xf32>
    %34 = vector.broadcast %1 : vector<1x8xf32> to vector<8x8xf32>
    %35 = arith.addf %33, %34 : vector<8x8xf32>
    %cst_21 = arith.constant dense<0xFF800000> : vector<8xf32>
    %36 = vector.multi_reduction <maximumf>, %35, %cst_21 [1] : vector<8x8xf32> to vector<8xf32>
    %37 = vector.shape_cast %36 : vector<8xf32> to vector<8x1xf32>
    %38 = vector.broadcast %37 : vector<8x1xf32> to vector<8x8xf32>
    %39 = arith.subf %35, %38 : vector<8x8xf32>
    %40 = math.exp %39 : vector<8x8xf32>
    %cst_22 = arith.constant dense<0.000000e+00> : vector<8xf32>
    %41 = vector.multi_reduction <add>, %40, %cst_22 [1] : vector<8x8xf32> to vector<8xf32>
    %42 = vector.shape_cast %41 : vector<8xf32> to vector<8x1xf32>
    %43 = tpu.reciprocal %42 {approx = true} : vector<8x1xf32> -> vector<8x1xf32>
    %44 = vector.broadcast %43 : vector<8x1xf32> to vector<8x8xf32>
    %45 = arith.mulf %40, %44 : vector<8x8xf32>
    %46 = arith.truncf %45 : vector<8x8xf32> to vector<8x8xbf16>
    %cst_23 = arith.constant dense<0.000000e+00> : vector<8x16xf32>
    %47 = tpu.matmul %46, %30, %cst_23 {dimension_numbers = #tpu.dot_dimension_numbers<[1], [0], [0], [1], [0, 0, 1, 1], [], []>} : vector<8x8xbf16>, vector<8x16xbf16>, vector<8x16xf32> -> vector<8x16xf32>
    %48 = tpu.concatenate %24, %47 in 1 : vector<8x16xf32>, vector<8x16xf32> -> vector<8x32xf32>
    %49 = arith.truncf %48 : vector<8x32xf32> to vector<8x32xbf16>
    %c0_24 = arith.constant 0 : index
    %c0_25 = arith.constant 0 : index
    %c0_26 = arith.constant 0 : index
    %50 = vector.load %arg3[%c0_24, %c0_25, %c0_26] : memref<1x8x32xbf16, #tpu.memory_space<vmem>>, vector<1x8x32xbf16>
    %51 = vector.shape_cast %50 : vector<1x8x32xbf16> to vector<8x32xbf16>
    %52 = vector.shape_cast %49 : vector<8x32xbf16> to vector<1x8x32xbf16>
    tpu.vector_store %arg3[%c0_24, %c0_25, %c0_26], %52 {strides = array<i32>} : memref<1x8x32xbf16, #tpu.memory_space<vmem>>, vector<1x8x32xbf16>,
    return
  }
  func.func @transform_0(%arg0: i32) -> (i32, i32, i32) {
    %c0_i32 = arith.constant 0 : i32
    %c0_i32_0 = arith.constant 0 : i32
    %c0_i32_1 = arith.constant 0 : i32
    return %arg0, %c0_i32, %c0_i32_0 : i32, i32, i32
  }
  func.func @transform_1(%arg0: i32) -> (i32, i32, i32) {
    %c0_i32 = arith.constant 0 : i32
    %c0_i32_0 = arith.constant 0 : i32
    %c0_i32_1 = arith.constant 0 : i32
    return %arg0, %c0_i32, %c0_i32_0 : i32, i32, i32
  }
  func.func @transform_2(%arg0: i32) -> (i32, i32, i32) {
    %c0_i32 = arith.constant 0 : i32
    %c0_i32_0 = arith.constant 0 : i32
    %c0_i32_1 = arith.constant 0 : i32
    return %arg0, %c0_i32, %c0_i32_0 : i32, i32, i32
  }
}

module attributes {stable_mosaic.version = 11 : i64} {
  func.func @_linear_kernel(%arg0: i32, %arg1: i32, %arg2: memref<16x32xbf16, #tpu.memory_space<vmem>>, %arg3: memref<32x32xbf16, #tpu.memory_space<vmem>>, %arg4: memref<1x32xf32, #tpu.memory_space<vmem>>, %arg5: memref<16x32xbf16, #tpu.memory_space<vmem>>, %arg6: memref<1x32xf32, #tpu.memory_space<vmem>>, %arg7: memref<1x32xf32, #tpu.memory_space<vmem>>, %arg8: memref<16x32xbf16, #tpu.memory_space<vmem>>) attributes {dimension_semantics = [#tpu.dimension_semantics<parallel>, #tpu.dimension_semantics<parallel>], iteration_bounds = array<i64: 1, 1>, scalar_prefetch = 0 : i64, scratch_operands = 0 : i64, tpu.core_type = #tpu.core_type<tc>, window_params = [{transform_indices = @transform_0, window_bounds = array<i64: 16, 32>}, {transform_indices = @transform_1, window_bounds = array<i64: 32, 32>}, {transform_indices = @transform_2, window_bounds = array<i64: 1, 32>}, {transform_indices = @transform_3, window_bounds = array<i64: 16, 32>}, {pipeline_mode = #tpu.pipeline_mode<synchronous>, transform_indices = @transform_4, window_bounds = array<i64: 1, 32>}, {pipeline_mode = #tpu.pipeline_mode<synchronous>, transform_indices = @transform_5, window_bounds = array<i64: 1, 32>}, {transform_indices = @transform_6, window_bounds = array<i64: 16, 32>}]} {
    %c0 = arith.constant 0 : index
    %c0_0 = arith.constant 0 : index
    %0 = vector.load %arg2[%c0, %c0_0] : memref<16x32xbf16, #tpu.memory_space<vmem>>, vector<16x32xbf16>
    %c0_1 = arith.constant 0 : index
    %c0_2 = arith.constant 0 : index
    %1 = vector.load %arg3[%c0_1, %c0_2] : memref<32x32xbf16, #tpu.memory_space<vmem>>, vector<32x32xbf16>
    %cst = arith.constant dense<0.000000e+00> : vector<16x32xf32>
    %2 = tpu.matmul %0, %1, %cst {dimension_numbers = #tpu.dot_dimension_numbers<[1], [0], [0], [1], [0, 0, 1, 1], [], []>} : vector<16x32xbf16>, vector<32x32xbf16>, vector<16x32xf32> -> vector<16x32xf32>
    %c0_3 = arith.constant 0 : index
    %c0_4 = arith.constant 0 : index
    %3 = vector.load %arg4[%c0_3, %c0_4] : memref<1x32xf32, #tpu.memory_space<vmem>>, vector<1x32xf32>
    %4 = vector.broadcast %3 : vector<1x32xf32> to vector<16x32xf32>
    %5 = arith.addf %2, %4 : vector<16x32xf32>
    %c0_5 = arith.constant 0 : index
    %c0_6 = arith.constant 0 : index
    %6 = vector.load %arg5[%c0_5, %c0_6] : memref<16x32xbf16, #tpu.memory_space<vmem>>, vector<16x32xbf16>
    %7 = arith.extf %6 : vector<16x32xbf16> to vector<16x32xf32>
    %8 = arith.addf %5, %7 : vector<16x32xf32>
    %cst_7 = arith.constant dense<0.000000e+00> : vector<16xf32>
    %9 = vector.multi_reduction <add>, %8, %cst_7 [1] : vector<16x32xf32> to vector<16xf32>
    %10 = vector.shape_cast %9 : vector<16xf32> to vector<16x1xf32>
    %cst_8 = arith.constant 3.200000e+01 : f32
    %11 = vector.broadcast %cst_8 : f32 to vector<16x1xf32>
    %12 = arith.divf %10, %11 : vector<16x1xf32>
    %13 = vector.broadcast %12 : vector<16x1xf32> to vector<16x32xf32>
    %14 = arith.subf %8, %13 : vector<16x32xf32>
    %15 = arith.mulf %14, %14 : vector<16x32xf32>
    %cst_9 = arith.constant dense<0.000000e+00> : vector<16xf32>
    %16 = vector.multi_reduction <add>, %15, %cst_9 [1] : vector<16x32xf32> to vector<16xf32>
    %17 = vector.shape_cast %16 : vector<16xf32> to vector<16x1xf32>
    %cst_10 = arith.constant 3.200000e+01 : f32
    %18 = vector.broadcast %cst_10 : f32 to vector<16x1xf32>
    %19 = arith.divf %17, %18 : vector<16x1xf32>
    %20 = vector.broadcast %12 : vector<16x1xf32> to vector<16x32xf32>
    %21 = arith.subf %8, %20 : vector<16x32xf32>
    %cst_11 = arith.constant 9.99999974E-6 : f32
    %22 = vector.broadcast %cst_11 : f32 to vector<16x1xf32>
    %23 = arith.addf %19, %22 : vector<16x1xf32>
    %24 = math.rsqrt %23 : vector<16x1xf32>
    %25 = vector.broadcast %24 : vector<16x1xf32> to vector<16x32xf32>
    %26 = arith.mulf %21, %25 : vector<16x32xf32>
    %c0_12 = arith.constant 0 : index
    %c0_13 = arith.constant 0 : index
    %27 = vector.load %arg6[%c0_12, %c0_13] : memref<1x32xf32, #tpu.memory_space<vmem>>, vector<1x32xf32>
    %28 = vector.broadcast %27 : vector<1x32xf32> to vector<16x32xf32>
    %29 = arith.mulf %26, %28 : vector<16x32xf32>
    %c0_14 = arith.constant 0 : index
    %c0_15 = arith.constant 0 : index
    %30 = vector.load %arg7[%c0_14, %c0_15] : memref<1x32xf32, #tpu.memory_space<vmem>>, vector<1x32xf32>
    %31 = vector.broadcast %30 : vector<1x32xf32> to vector<16x32xf32>
    %32 = arith.addf %29, %31 : vector<16x32xf32>
    %33 = arith.truncf %32 : vector<16x32xf32> to vector<16x32xbf16>
    %c0_16 = arith.constant 0 : index
    %c0_17 = arith.constant 0 : index
    %34 = vector.load %arg8[%c0_16, %c0_17] : memref<16x32xbf16, #tpu.memory_space<vmem>>, vector<16x32xbf16>
    tpu.vector_store %arg8[%c0_16, %c0_17], %33 {strides = array<i32>} : memref<16x32xbf16, #tpu.memory_space<vmem>>, vector<16x32xbf16>,
    return
  }
  func.func @transform_0(%arg0: i32, %arg1: i32) -> (i32, i32) {
    %c0_i32 = arith.constant 0 : i32
    %c0_i32_0 = arith.constant 0 : i32
    return %arg0, %c0_i32 : i32, i32
  }
  func.func @transform_1(%arg0: i32, %arg1: i32) -> (i32, i32) {
    %c0_i32 = arith.constant 0 : i32
    %c0_i32_0 = arith.constant 0 : i32
    return %c0_i32, %arg1 : i32, i32
  }
  func.func @transform_2(%arg0: i32, %arg1: i32) -> (i32, i32) {
    %c0_i32 = arith.constant 0 : i32
    %c0_i32_0 = arith.constant 0 : i32
    return %c0_i32, %arg1 : i32, i32
  }
  func.func @transform_3(%arg0: i32, %arg1: i32) -> (i32, i32) {
    %c0_i32 = arith.constant 0 : i32
    %c0_i32_0 = arith.constant 0 : i32
    return %arg0, %c0_i32 : i32, i32
  }
  func.func @transform_4(%arg0: i32, %arg1: i32) -> (i32, i32) {
    %c0_i32 = arith.constant 0 : i32
    %c0_i32_0 = arith.constant 0 : i32
    %c0_i32_1 = arith.constant 0 : i32
    return %c0_i32, %c0_i32_0 : i32, i32
  }
  func.func @transform_5(%arg0: i32, %arg1: i32) -> (i32, i32) {
    %c0_i32 = arith.constant 0 : i32
    %c0_i32_0 = arith.constant 0 : i32
    %c0_i32_1 = arith.constant 0 : i32
    return %c0_i32, %c0_i32_0 : i32, i32
  }
  func.func @transform_6(%arg0: i32, %arg1: i32) -> (i32, i32) {
    %c0_i32 = arith.constant 0 : i32
    return %arg0, %arg1 : i32, i32
  }
}

module attributes {stable_mosaic.version = 11 : i64} {
  func.func @_linear_kernel(%arg0: i32, %arg1: i32, %arg2: memref<16x32xbf16, #tpu.memory_space<vmem>>, %arg3: memref<32x64xbf16, #tpu.memory_space<vmem>>, %arg4: memref<1x64xf32, #tpu.memory_space<vmem>>, %arg5: memref<16x64xbf16, #tpu.memory_space<vmem>>) attributes {dimension_semantics = [#tpu.dimension_semantics<parallel>, #tpu.dimension_semantics<parallel>], iteration_bounds = array<i64: 1, 1>, scalar_prefetch = 0 : i64, scratch_operands = 0 : i64, tpu.core_type = #tpu.core_type<tc>, window_params = [{transform_indices = @transform_0, window_bounds = array<i64: 16, 32>}, {transform_indices = @transform_1, window_bounds = array<i64: 32, 64>}, {transform_indices = @transform_2, window_bounds = array<i64: 1, 64>}, {transform_indices = @transform_3, window_bounds = array<i64: 16, 64>}]} {
    %c0 = arith.constant 0 : index
    %c0_0 = arith.constant 0 : index
    %0 = vector.load %arg2[%c0, %c0_0] : memref<16x32xbf16, #tpu.memory_space<vmem>>, vector<16x32xbf16>
    %c0_1 = arith.constant 0 : index
    %c0_2 = arith.constant 0 : index
    %1 = vector.load %arg3[%c0_1, %c0_2] : memref<32x64xbf16, #tpu.memory_space<vmem>>, vector<32x64xbf16>
    %cst = arith.constant dense<0.000000e+00> : vector<16x64xf32>
    %2 = tpu.matmul %0, %1, %cst {dimension_numbers = #tpu.dot_dimension_numbers<[1], [0], [0], [1], [0, 0, 1, 1], [], []>} : vector<16x32xbf16>, vector<32x64xbf16>, vector<16x64xf32> -> vector<16x64xf32>
    %c0_3 = arith.constant 0 : index
    %c0_4 = arith.constant 0 : index
    %3 = vector.load %arg4[%c0_3, %c0_4] : memref<1x64xf32, #tpu.memory_space<vmem>>, vector<1x64xf32>
    %4 = vector.broadcast %3 : vector<1x64xf32> to vector<16x64xf32>
    %5 = arith.addf %2, %4 : vector<16x64xf32>
    %cst_5 = arith.constant 5.000000e-01 : f32
    %6 = vector.broadcast %cst_5 : f32 to vector<16x64xf32>
    %7 = arith.mulf %6, %5 : vector<16x64xf32>
    %cst_6 = arith.constant 4.471500e-02 : f32
    %8 = vector.broadcast %cst_6 : f32 to vector<16x64xf32>
    %9 = arith.mulf %8, %5 : vector<16x64xf32>
    %10 = arith.mulf %9, %5 : vector<16x64xf32>
    %11 = arith.mulf %10, %5 : vector<16x64xf32>
    %12 = arith.addf %5, %11 : vector<16x64xf32>
    %cst_7 = arith.constant 0.797884583 : f32
    %13 = vector.broadcast %cst_7 : f32 to vector<16x64xf32>
    %14 = arith.mulf %13, %12 : vector<16x64xf32>
    %15 = math.tanh %14 : vector<16x64xf32>
    %cst_8 = arith.constant 1.000000e+00 : f32
    %16 = vector.broadcast %cst_8 : f32 to vector<16x64xf32>
    %17 = arith.addf %16, %15 : vector<16x64xf32>
    %18 = arith.mulf %7, %17 : vector<16x64xf32>
    %19 = arith.truncf %18 : vector<16x64xf32> to vector<16x64xbf16>
    %c0_9 = arith.constant 0 : index
    %c0_10 = arith.constant 0 : index
    %20 = vector.load %arg5[%c0_9, %c0_10] : memref<16x64xbf16, #tpu.memory_space<vmem>>, vector<16x64xbf16>
    tpu.vector_store %arg5[%c0_9, %c0_10], %19 {strides = array<i32>} : memref<16x64xbf16, #tpu.memory_space<vmem>>, vector<16x64xbf16>,
    return
  }
  func.func @transform_0(%arg0: i32, %arg1: i32) -> (i32, i32) {
    %c0_i32 = arith.constant 0 : i32
    %c0_i32_0 = arith.constant 0 : i32
    return %arg0, %c0_i32 : i32, i32
  }
  func.func @transform_1(%arg0: i32, %arg1: i32) -> (i32, i32) {
    %c0_i32 = arith.constant 0 : i32
    %c0_i32_0 = arith.constant 0 : i32
    return %c0_i32, %arg1 : i32, i32
  }
  func.func @transform_2(%arg0: i32, %arg1: i32) -> (i32, i32) {
    %c0_i32 = arith.constant 0 : i32
    %c0_i32_0 = arith.constant 0 : i32
    return %c0_i32, %arg1 : i32, i32
  }
  func.func @transform_3(%arg0: i32, %arg1: i32) -> (i32, i32) {
    %c0_i32 = arith.constant 0 : i32
    return %arg0, %arg1 : i32, i32
  }
}

module attributes {stable_mosaic.version = 11 : i64} {
  func.func @_linear_kernel(%arg0: i32, %arg1: i32, %arg2: memref<16x64xbf16, #tpu.memory_space<vmem>>, %arg3: memref<64x32xbf16, #tpu.memory_space<vmem>>, %arg4: memref<1x32xf32, #tpu.memory_space<vmem>>, %arg5: memref<16x32xbf16, #tpu.memory_space<vmem>>, %arg6: memref<1x32xf32, #tpu.memory_space<vmem>>, %arg7: memref<1x32xf32, #tpu.memory_space<vmem>>, %arg8: memref<16x32xbf16, #tpu.memory_space<vmem>>) attributes {dimension_semantics = [#tpu.dimension_semantics<parallel>, #tpu.dimension_semantics<parallel>], iteration_bounds = array<i64: 1, 1>, scalar_prefetch = 0 : i64, scratch_operands = 0 : i64, tpu.core_type = #tpu.core_type<tc>, window_params = [{transform_indices = @transform_0, window_bounds = array<i64: 16, 64>}, {transform_indices = @transform_1, window_bounds = array<i64: 64, 32>}, {transform_indices = @transform_2, window_bounds = array<i64: 1, 32>}, {transform_indices = @transform_3, window_bounds = array<i64: 16, 32>}, {pipeline_mode = #tpu.pipeline_mode<synchronous>, transform_indices = @transform_4, window_bounds = array<i64: 1, 32>}, {pipeline_mode = #tpu.pipeline_mode<synchronous>, transform_indices = @transform_5, window_bounds = array<i64: 1, 32>}, {transform_indices = @transform_6, window_bounds = array<i64: 16, 32>}]} {
    %c0 = arith.constant 0 : index
    %c0_0 = arith.constant 0 : index
    %0 = vector.load %arg2[%c0, %c0_0] : memref<16x64xbf16, #tpu.memory_space<vmem>>, vector<16x64xbf16>
    %c0_1 = arith.constant 0 : index
    %c0_2 = arith.constant 0 : index
    %1 = vector.load %arg3[%c0_1, %c0_2] : memref<64x32xbf16, #tpu.memory_space<vmem>>, vector<64x32xbf16>
    %cst = arith.constant dense<0.000000e+00> : vector<16x32xf32>
    %2 = tpu.matmul %0, %1, %cst {dimension_numbers = #tpu.dot_dimension_numbers<[1], [0], [0], [1], [0, 0, 1, 1], [], []>} : vector<16x64xbf16>, vector<64x32xbf16>, vector<16x32xf32> -> vector<16x32xf32>
    %c0_3 = arith.constant 0 : index
    %c0_4 = arith.constant 0 : index
    %3 = vector.load %arg4[%c0_3, %c0_4] : memref<1x32xf32, #tpu.memory_space<vmem>>, vector<1x32xf32>
    %4 = vector.broadcast %3 : vector<1x32xf32> to vector<16x32xf32>
    %5 = arith.addf %2, %4 : vector<16x32xf32>
    %c0_5 = arith.constant 0 : index
    %c0_6 = arith.constant 0 : index
    %6 = vector.load %arg5[%c0_5, %c0_6] : memref<16x32xbf16, #tpu.memory_space<vmem>>, vector<16x32xbf16>
    %7 = arith.extf %6 : vector<16x32xbf16> to vector<16x32xf32>
    %8 = arith.addf %5, %7 : vector<16x32xf32>
    %cst_7 = arith.constant dense<0.000000e+00> : vector<16xf32>
    %9 = vector.multi_reduction <add>, %8, %cst_7 [1] : vector<16x32xf32> to vector<16xf32>
    %10 = vector.shape_cast %9 : vector<16xf32> to vector<16x1xf32>
    %cst_8 = arith.constant 3.200000e+01 : f32
    %11 = vector.broadcast %cst_8 : f32 to vector<16x1xf32>
    %12 = arith.divf %10, %11 : vector<16x1xf32>
    %13 = vector.broadcast %12 : vector<16x1xf32> to vector<16x32xf32>
    %14 = arith.subf %8, %13 : vector<16x32xf32>
    %15 = arith.mulf %14, %14 : vector<16x32xf32>
    %cst_9 = arith.constant dense<0.000000e+00> : vector<16xf32>
    %16 = vector.multi_reduction <add>, %15, %cst_9 [1] : vector<16x32xf32> to vector<16xf32>
    %17 = vector.shape_cast %16 : vector<16xf32> to vector<16x1xf32>
    %cst_10 = arith.constant 3.200000e+01 : f32
    %18 = vector.broadcast %cst_10 : f32 to vector<16x1xf32>
    %19 = arith.divf %17, %18 : vector<16x1xf32>
    %20 = vector.broadcast %12 : vector<16x1xf32> to vector<16x32xf32>
    %21 = arith.subf %8, %20 : vector<16x32xf32>
    %cst_11 = arith.constant 9.99999974E-6 : f32
    %22 = vector.broadcast %cst_11 : f32 to vector<16x1xf32>
    %23 = arith.addf %19, %22 : vector<16x1xf32>
    %24 = math.rsqrt %23 : vector<16x1xf32>
    %25 = vector.broadcast %24 : vector<16x1xf32> to vector<16x32xf32>
    %26 = arith.mulf %21, %25 : vector<16x32xf32>
    %c0_12 = arith.constant 0 : index
    %c0_13 = arith.constant 0 : index
    %27 = vector.load %arg6[%c0_12, %c0_13] : memref<1x32xf32, #tpu.memory_space<vmem>>, vector<1x32xf32>
    %28 = vector.broadcast %27 : vector<1x32xf32> to vector<16x32xf32>
    %29 = arith.mulf %26, %28 : vector<16x32xf32>
    %c0_14 = arith.constant 0 : index
    %c0_15 = arith.constant 0 : index
    %30 = vector.load %arg7[%c0_14, %c0_15] : memref<1x32xf32, #tpu.memory_space<vmem>>, vector<1x32xf32>
    %31 = vector.broadcast %30 : vector<1x32xf32> to vector<16x32xf32>
    %32 = arith.addf %29, %31 : vector<16x32xf32>
    %33 = arith.truncf %32 : vector<16x32xf32> to vector<16x32xbf16>
    %c0_16 = arith.constant 0 : index
    %c0_17 = arith.constant 0 : index
    %34 = vector.load %arg8[%c0_16, %c0_17] : memref<16x32xbf16, #tpu.memory_space<vmem>>, vector<16x32xbf16>
    tpu.vector_store %arg8[%c0_16, %c0_17], %33 {strides = array<i32>} : memref<16x32xbf16, #tpu.memory_space<vmem>>, vector<16x32xbf16>,
    return
  }
  func.func @transform_0(%arg0: i32, %arg1: i32) -> (i32, i32) {
    %c0_i32 = arith.constant 0 : i32
    %c0_i32_0 = arith.constant 0 : i32
    return %arg0, %c0_i32 : i32, i32
  }
  func.func @transform_1(%arg0: i32, %arg1: i32) -> (i32, i32) {
    %c0_i32 = arith.constant 0 : i32
    %c0_i32_0 = arith.constant 0 : i32
    return %c0_i32, %arg1 : i32, i32
  }
  func.func @transform_2(%arg0: i32, %arg1: i32) -> (i32, i32) {
    %c0_i32 = arith.constant 0 : i32
    %c0_i32_0 = arith.constant 0 : i32
    return %c0_i32, %arg1 : i32, i32
  }
  func.func @transform_3(%arg0: i32, %arg1: i32) -> (i32, i32) {
    %c0_i32 = arith.constant 0 : i32
    %c0_i32_0 = arith.constant 0 : i32
    return %arg0, %c0_i32 : i32, i32
  }
  func.func @transform_4(%arg0: i32, %arg1: i32) -> (i32, i32) {
    %c0_i32 = arith.constant 0 : i32
    %c0_i32_0 = arith.constant 0 : i32
    %c0_i32_1 = arith.constant 0 : i32
    return %c0_i32, %c0_i32_0 : i32, i32
  }
  func.func @transform_5(%arg0: i32, %arg1: i32) -> (i32, i32) {
    %c0_i32 = arith.constant 0 : i32
    %c0_i32_0 = arith.constant 0 : i32
    %c0_i32_1 = arith.constant 0 : i32
    return %c0_i32, %c0_i32_0 : i32, i32
  }
  func.func @transform_6(%arg0: i32, %arg1: i32) -> (i32, i32) {
    %c0_i32 = arith.constant 0 : i32
    return %arg0, %arg1 : i32, i32
  }
}

module attributes {stable_mosaic.version = 11 : i64} {
  func.func @_pooler_fc_kernel(%arg0: memref<2x32xbf16, #tpu.memory_space<vmem>>, %arg1: memref<32x32xbf16, #tpu.memory_space<vmem>>, %arg2: memref<1x32xf32, #tpu.memory_space<vmem>>, %arg3: memref<32x2xbf16, #tpu.memory_space<vmem>>, %arg4: memref<1x2xf32, #tpu.memory_space<vmem>>, %arg5: memref<2x2xf32, #tpu.memory_space<vmem>>) attributes {dimension_semantics = [], scalar_prefetch = 0 : i64, scratch_operands = 0 : i64, tpu.core_type = #tpu.core_type<tc>} {
    %c0 = arith.constant 0 : index
    %c0_0 = arith.constant 0 : index
    %0 = vector.load %arg0[%c0, %c0_0] : memref<2x32xbf16, #tpu.memory_space<vmem>>, vector<2x32xbf16>
    %c0_1 = arith.constant 0 : index
    %c0_2 = arith.constant 0 : index
    %1 = vector.load %arg1[%c0_1, %c0_2] : memref<32x32xbf16, #tpu.memory_space<vmem>>, vector<32x32xbf16>
    %cst = arith.constant dense<0.000000e+00> : vector<2x32xf32>
    %2 = tpu.matmul %0, %1, %cst {dimension_numbers = #tpu.dot_dimension_numbers<[1], [0], [0], [1], [0, 0, 1, 1], [], []>} : vector<2x32xbf16>, vector<32x32xbf16>, vector<2x32xf32> -> vector<2x32xf32>
    %c0_3 = arith.constant 0 : index
    %c0_4 = arith.constant 0 : index
    %3 = vector.load %arg2[%c0_3, %c0_4] : memref<1x32xf32, #tpu.memory_space<vmem>>, vector<1x32xf32>
    %4 = vector.broadcast %3 : vector<1x32xf32> to vector<2x32xf32>
    %5 = arith.addf %2, %4 : vector<2x32xf32>
    %6 = math.tanh %5 : vector<2x32xf32>
    %7 = arith.truncf %6 : vector<2x32xf32> to vector<2x32xbf16>
    %c0_5 = arith.constant 0 : index
    %c0_6 = arith.constant 0 : index
    %8 = vector.load %arg3[%c0_5, %c0_6] : memref<32x2xbf16, #tpu.memory_space<vmem>>, vector<32x2xbf16>
    %cst_7 = arith.constant dense<0.000000e+00> : vector<2x2xf32>
    %9 = tpu.matmul %7, %8, %cst_7 {dimension_numbers = #tpu.dot_dimension_numbers<[1], [0], [0], [1], [0, 0, 1, 1], [], []>} : vector<2x32xbf16>, vector<32x2xbf16>, vector<2x2xf32> -> vector<2x2xf32>
    %c0_8 = arith.constant 0 : index
    %c0_9 = arith.constant 0 : index
    %10 = vector.load %arg4[%c0_8, %c0_9] : memref<1x2xf32, #tpu.memory_space<vmem>>, vector<1x2xf32>
    %11 = vector.broadcast %10 : vector<1x2xf32> to vector<2x2xf32>
    %12 = arith.addf %9, %11 : vector<2x2xf32>
    %c0_10 = arith.constant 0 : index
    %c0_11 = arith.constant 0 : index
    %13 = vector.load %arg5[%c0_10, %c0_11] : memref<2x2xf32, #tpu.memory_space<vmem>>, vector<2x2xf32>
    tpu.vector_store %arg5[%c0_10, %c0_11], %12 {strides = array<i32>} : memref<2x2xf32, #tpu.memory_space<vmem>>, vector<2x2xf32>,
    return
  }
}

</mosaic_0001>

<llo_original>
// kernel: roberta_classifier_forward.15
$region0: #{roberta_classifier_forward.15}
  #allocation0 [shape = 'u32[]', space=smem, size = 0x4, offset = 0x4, fixed_abs, tag = 'smem constant byte address 0x4 - core index']
  #allocation1 [shape = 'u32[144,128]{1,0:T(1,128)}', space=vmem, size = 0x12000, scoped, tag = 'internal scratch']
  %s0 = inlined_call_operand.vmem [shape: bf16[16,32], index: 0, kind: input, shape index: {}]
  %s1 = inlined_call_operand.vmem [shape: bf16[32,32], index: 1, kind: input, shape index: {}]
  %s2 = inlined_call_operand.vmem [shape: f32[1,32], index: 2, kind: input, shape index: {}]
  %s3 = inlined_call_operand.vmem [shape: bf16[16,32], index: 3, kind: input, shape index: {}]
  %s4 = inlined_call_operand.vmem [shape: f32[1,32], index: 4, kind: input, shape index: {}]
  %s5 = inlined_call_operand.vmem [shape: f32[1,32], index: 5, kind: input, shape index: {}]
  %s6 = inlined_call_operand.vmem [shape: bf16[16,32], index: 6, kind: output, shape index: {}]
  %s7 = sld [smem:[#allocation0]]
  $region34: #{roberta_classifier_forward.15} parent=0
    _
  %s9 = ssub.s32 1, %s7
  %s10 = scalar_select 0, %s9, %s7
  // Predicated region
  $region2: #{roberta_classifier_forward.15} parent=0 // pred_check
    _
  $region3: #{roberta_classifier_forward.15} parent=0 // pred_check_branch
    %12 = sbr.rel (0) target = $region5
  $region4: #{roberta_classifier_forward.15} parent=0 // pred_region
    _
  $region5: #{roberta_classifier_forward.15} parent=0 // pred_fallthru
    _
  // Predicated region
  $region6: #{roberta_classifier_forward.15} parent=0 // pred_check
    _
  $region7: #{roberta_classifier_forward.15} parent=0 // pred_check_branch
    %14 = sbr.rel (0) target = $region9
  $region8: #{roberta_classifier_forward.15} parent=0 // pred_region
    _
  $region9: #{roberta_classifier_forward.15} parent=0 // pred_fallthru
    _
  // Predicated region
  $region10: #{roberta_classifier_forward.15} parent=0 // pred_check
    _
  $region11: #{roberta_classifier_forward.15} parent=0 // pred_check_branch
    %16 = sbr.rel (0) target = $region13
  $region12: #{roberta_classifier_forward.15} parent=0 // pred_region
    _
  $region13: #{roberta_classifier_forward.15} parent=0 // pred_fallthru
    _
  // Predicated region
  $region14: #{roberta_classifier_forward.15} parent=0 // pred_check
    _
  $region15: #{roberta_classifier_forward.15} parent=0 // pred_check_branch
    %18 = sbr.rel (0) target = $region17
  $region16: #{roberta_classifier_forward.15} parent=0 // pred_region
    _
  $region17: #{roberta_classifier_forward.15} parent=0 // pred_fallthru
    _
  // Predicated region
  $region18: #{roberta_classifier_forward.15} parent=0 // pred_check
    _
  $region19: #{roberta_classifier_forward.15} parent=0 // pred_check_branch
    %20 = sbr.rel (0) target = $region21
  $region20: #{roberta_classifier_forward.15} parent=0 // pred_region
    _
  $region21: #{roberta_classifier_forward.15} parent=0 // pred_fallthru
    _
  // Predicated region
  $region22: #{roberta_classifier_forward.15} parent=0 // pred_check
    _
  $region23: #{roberta_classifier_forward.15} parent=0 // pred_check_branch
    %22 = sbr.rel (0) target = $region25
  $region24: #{roberta_classifier_forward.15} parent=0 // pred_region
    _
  $region25: #{roberta_classifier_forward.15} parent=0 // pred_fallthru
    _
  %v24 = vld [vmem:[%s0] sm:$0xf]
  %v25 = vld [vmem:[%s0 + $0x4] sm:$0xf]
  %v26 = vld [vmem:[%s1] sm:$0xf]
  %v27 = vld [vmem:[%s1 + $0x4] sm:$0xf]
  %v28 = vld [vmem:[%s1 + $0x8] sm:$0xf]
  %v29 = vld [vmem:[%s1 + $0xc] sm:$0xf]
  %v30 = vld [vmem:[%s2] sm:$0x1]
  %v32 = vlaneseq
  %v33 = vshrl.u32 %v32, 7
  %v34 = vsub.s32 0, %v33
  %v35 = vrot.slane %v30, %v34
  %v39 = vunpack.c.l.b16 %v24
  %v40 = vunpack.c.l.b16 %v25
  %v41 = vpack.c.b16 %v40, %v39
  %v46 = vunpack.c.l.b16 %v26
  %v47 = vunpack.c.l.b16 %v27
  %v48 = vunpack.c.l.b16 %v28
  %v49 = vunpack.c.l.b16 %v29
  %v50 = vpack.c.b16 %v47, %v46
  %v51 = vpack.c.b16 %v49, %v48
  %vm54 = vcmask 261120
  %v56 = vsel %vm54, %v41, 0
  %58 = vmatprep.subr.bf16.mxu0 0
  %59 = vmatpush1.bf16.msra.mxu0 0
  %60 = vmatprep.subr.bf16.mxu0 0
  %61 = vmatpush1.bf16.msra.mxu0 0
  %62 = vmatprep.subr.bf16.mxu0 0
  %63 = vmatpush1.bf16.msra.mxu0 0
  %64 = vmatprep.subr.bf16.mxu0 0
  %65 = vmatpush1.bf16.msra.mxu0 0
  %66 = vmatprep.subr.bf16.mxu0 0
  %67 = vmatpush1.bf16.msra.mxu0 0
  %68 = vmatprep.subr.bf16.mxu0 0
  %69 = vmatpush1.bf16.msra.mxu0 0
  %70 = vmatprep.subr.bf16.mxu0 0
  %71 = vmatpush1.bf16.msra.mxu0 %v51
  %72 = vmatprep.subr.bf16.mxu0 0
  %73 = vmatpush1.bf16.msra.mxu0 %v50
  %74 = vmatprep.subr.bf16.mxu0 0
  %75 = vmatpush2.bf16.msra.mxu0 0
  %76 = vmatprep.subr.bf16.mxu0 0
  %77 = vmatpush2.bf16.msra.mxu0 0
  %78 = vmatprep.subr.bf16.mxu0 0
  %79 = vmatpush2.bf16.msra.mxu0 0
  %80 = vmatprep.subr.bf16.mxu0 0
  %81 = vmatpush2.bf16.msra.mxu0 0
  %82 = vmatprep.subr.bf16.mxu0 0
  %83 = vmatpush2.bf16.msra.mxu0 0
  %84 = vmatprep.subr.bf16.mxu0 0
  %85 = vmatpush2.bf16.msra.mxu0 0
  %86 = vmatprep.subr.bf16.mxu0 0
  %87 = vmatpush2.bf16.msra.mxu0 0
  %88 = vmatprep.subr.bf16.mxu0 0
  %89 = vmatpush2.bf16.msra.mxu0 0
  %90 = vmatprep.mubr.bf16.mxu0 0
  %91 = vmatmul.mubr.bf16.gmra.mxu0 %v56
  %v92 = vpop.f32.mrf.mxu0
  %v93 = vadd.f32 %v35, %v92
  %v94 = vpop.f32.mrf.mxu0
  %v95 = vpop.f32.mrf.mxu0
  %v96 = vadd.f32 %v35, %v95
  %v97 = vpop.f32.mrf.mxu0
  %98 = vdwg.mxu0
  %v99 = vld [vmem:[%s3] sm:$0xf]
  %v100 = vld [vmem:[%s3 + $0x4] sm:$0xf]
  %v101 = vunpack.c.l.bf16 %v99
  %v102 = vunpack.c.l.bf16 %v100
  %v103 = vadd.f32 %v93, %v101
  %v104 = vadd.f32 %v96, %v102
  %v105 = vsel %vm54, %v103, 0.0
  %106 = vadd.xlane.f32.xlu0 %v105
  %v107 = vpop.xlane.xlu0 %106
  %v108 = vsel %vm54, %v104, 0.0
  %109 = vadd.xlane.f32.xlu0 %v108
  %v110 = vpop.xlane.xlu0 %109
  %v111 = vrcp.pop 32.0
  %v112 = vmul.f32 %v107, %v111
  %v113 = vmul.f32 %v110, %v111
  %v114 = vsub.f32 %v103, %v112
  %v115 = vsub.f32 %v104, %v113
  %v116 = vmul.f32 %v114, %v114
  %v117 = vmul.f32 %v115, %v115
  %v118 = vsel %vm54, %v116, 0.0
  %119 = vadd.xlane.f32.xlu0 %v118
  %v120 = vpop.xlane.xlu0 %119
  %v121 = vsel %vm54, %v117, 0.0
  %122 = vadd.xlane.f32.xlu0 %v121
  %v123 = vpop.xlane.xlu0 %122
  %v124 = vmul.f32 %v120, %v111
  %v125 = vmul.f32 %v123, %v111
  %v126 = vadd.f32 %v124, 1e-05
  %v127 = vadd.f32 %v125, 1e-05
  %v128 = vrsqrt.pop %v126
  %v129 = vrsqrt.pop %v127
  %v130 = vmul.f32 %v114, %v128
  %v131 = vmul.f32 %v115, %v129
  %v132 = vld [vmem:[%s4] sm:$0x1]
  %v134 = vlaneseq
  %v135 = vshrl.u32 %v134, 7
  %v136 = vsub.s32 0, %v135
  %v137 = vrot.slane %v132, %v136
  %v139 = vmul.f32 %v130, %v137
  %v140 = vmul.f32 %v131, %v137
  %v141 = vld [vmem:[%s5] sm:$0x1]
  %v143 = vlaneseq
  %v144 = vshrl.u32 %v143, 7
  %v145 = vsub.s32 0, %v144
  %v146 = vrot.slane %v141, %v145
  %v148 = vadd.f32 %v139, %v146
  %v149 = vadd.f32 %v140, %v146
  %v150 = vpack.c.bf16 %v149, %v148
  %v152 = vunpack.c.l.b16 %v150
  %v153 = vunpack.c.h.b16 %v150
  %v154 = vpack.c.b16 %v152, %v152
  %v155 = vpack.c.b16 %v153, %v153
  %vm158 = vcmask 257024
  %159 = vst.msk [vmem:[%s6] sm:$0xf] %vm158, %v154
  %160 = vst.msk [vmem:[%s6 + $0x4] sm:$0xf] %vm158, %v155
  // Predicated region
  $region26: #{roberta_classifier_forward.15} parent=0 // pred_check
    _
  $region27: #{roberta_classifier_forward.15} parent=0 // pred_check_branch
    %162 = sbr.rel (0) target = $region29
  $region28: #{roberta_classifier_forward.15} parent=0 // pred_region
    _
  $region29: #{roberta_classifier_forward.15} parent=0 // pred_fallthru
    _
  // Predicated region
  $region30: #{roberta_classifier_forward.15} parent=0 // pred_check
    _
  $region31: #{roberta_classifier_forward.15} parent=0 // pred_check_branch
    %164 = sbr.rel (0) target = $region33
  $region32: #{roberta_classifier_forward.15} parent=0 // pred_region
    _
  $region33: #{roberta_classifier_forward.15} parent=0 // pred_fallthru
    _

// kernel: roberta_classifier_forward.13
$region0: #{roberta_classifier_forward.13}
  #allocation0 [shape = 'u32[]', space=smem, size = 0x4, offset = 0x4, fixed_abs, tag = 'smem constant byte address 0x4 - core index']
  #allocation1 [shape = 'u32[144,128]{1,0:T(1,128)}', space=vmem, size = 0x12000, scoped, tag = 'internal scratch']
  %s0 = inlined_call_operand.vmem [shape: bf16[16,32], index: 0, kind: input, shape index: {}]
  %s1 = inlined_call_operand.vmem [shape: bf16[32,96], index: 1, kind: input, shape index: {}]
  %s2 = inlined_call_operand.vmem [shape: f32[1,96], index: 2, kind: input, shape index: {}]
  %s3 = inlined_call_operand.vmem [shape: bf16[16,96], index: 3, kind: output, shape index: {}]
  %s4 = sld [smem:[#allocation0]]
  $region22: #{roberta_classifier_forward.13} parent=0
    _
  %s6 = ssub.s32 1, %s4
  %s7 = scalar_select 0, %s6, %s4
  // Predicated region
  $region2: #{roberta_classifier_forward.13} parent=0 // pred_check
    _
  $region3: #{roberta_classifier_forward.13} parent=0 // pred_check_branch
    %9 = sbr.rel (0) target = $region5
  $region4: #{roberta_classifier_forward.13} parent=0 // pred_region
    _
  $region5: #{roberta_classifier_forward.13} parent=0 // pred_fallthru
    _
  // Predicated region
  $region6: #{roberta_classifier_forward.13} parent=0 // pred_check
    _
  $region7: #{roberta_classifier_forward.13} parent=0 // pred_check_branch
    %11 = sbr.rel (0) target = $region9
  $region8: #{roberta_classifier_forward.13} parent=0 // pred_region
    _
  $region9: #{roberta_classifier_forward.13} parent=0 // pred_fallthru
    _
  // Predicated region
  $region10: #{roberta_classifier_forward.13} parent=0 // pred_check
    _
  $region11: #{roberta_classifier_forward.13} parent=0 // pred_check_branch
    %13 = sbr.rel (0) target = $region13
  $region12: #{roberta_classifier_forward.13} parent=0 // pred_region
    _
  $region13: #{roberta_classifier_forward.13} parent=0 // pred_fallthru
    _
  %v15 = vld [vmem:[%s0] sm:$0xf]
  %v16 = vld [vmem:[%s0 + $0x4] sm:$0xf]
  %v17 = vld [vmem:[%s1] sm:$0xf]
  %v18 = vld [vmem:[%s1 + $0x4] sm:$0xf]
  %v19 = vld [vmem:[%s1 + $0x8] sm:$0xf]
  %v20 = vld [vmem:[%s1 + $0xc] sm:$0xf]
  %v21 = vld [vmem:[%s2] sm:$0x1]
  %v23 = vlaneseq
  %v24 = vshrl.u32 %v23, 7
  %v25 = vsub.s32 0, %v24
  %v26 = vrot.slane %v21, %v25
  %v30 = vunpack.c.l.b16 %v15
  %v31 = vunpack.c.l.b16 %v16
  %v32 = vpack.c.b16 %v31, %v30
  %v37 = vunpack.c.l.b16 %v17
  %v38 = vunpack.c.l.b16 %v18
  %v39 = vunpack.c.l.b16 %v19
  %v40 = vunpack.c.l.b16 %v20
  %v41 = vpack.c.b16 %v38, %v37
  %v42 = vpack.c.b16 %v40, %v39
  %vm45 = vcmask 261120
  %v47 = vsel %vm45, %v32, 0
  %49 = vmatprep.subr.bf16.mxu0 0
  %50 = vmatpush1.bf16.msra.mxu0 0
  %51 = vmatprep.subr.bf16.mxu0 0
  %52 = vmatpush1.bf16.msra.mxu0 0
  %53 = vmatprep.subr.bf16.mxu0 0
  %54 = vmatpush1.bf16.msra.mxu0 0
  %55 = vmatprep.subr.bf16.mxu0 0
  %56 = vmatpush1.bf16.msra.mxu0 0
  %57 = vmatprep.subr.bf16.mxu0 0
  %58 = vmatpush1.bf16.msra.mxu0 0
  %59 = vmatprep.subr.bf16.mxu0 0
  %60 = vmatpush1.bf16.msra.mxu0 0
  %61 = vmatprep.subr.bf16.mxu0 0
  %62 = vmatpush1.bf16.msra.mxu0 %v42
  %63 = vmatprep.subr.bf16.mxu0 0
  %64 = vmatpush1.bf16.msra.mxu0 %v41
  %65 = vmatprep.subr.bf16.mxu0 0
  %66 = vmatpush2.bf16.msra.mxu0 0
  %67 = vmatprep.subr.bf16.mxu0 0
  %68 = vmatpush2.bf16.msra.mxu0 0
  %69 = vmatprep.subr.bf16.mxu0 0
  %70 = vmatpush2.bf16.msra.mxu0 0
  %71 = vmatprep.subr.bf16.mxu0 0
  %72 = vmatpush2.bf16.msra.mxu0 0
  %73 = vmatprep.subr.bf16.mxu0 0
  %74 = vmatpush2.bf16.msra.mxu0 0
  %75 = vmatprep.subr.bf16.mxu0 0
  %76 = vmatpush2.bf16.msra.mxu0 0
  %77 = vmatprep.subr.bf16.mxu0 0
  %78 = vmatpush2.bf16.msra.mxu0 0
  %79 = vmatprep.subr.bf16.mxu0 0
  %80 = vmatpush2.bf16.msra.mxu0 0
  %81 = vmatprep.mubr.bf16.mxu0 0
  %82 = vmatmul.mubr.bf16.gmra.mxu0 %v47
  %v83 = vpop.f32.mrf.mxu0
  %v84 = vadd.f32 %v26, %v83
  %v85 = vpop.f32.mrf.mxu0
  %v86 = vpop.f32.mrf.mxu0
  %v87 = vadd.f32 %v26, %v86
  %v88 = vpop.f32.mrf.mxu0
  %89 = vdwg.mxu0
  %v90 = vpack.c.bf16 %v87, %v84
  %v92 = vunpack.c.l.b16 %v90
  %v93 = vunpack.c.h.b16 %v90
  %v94 = vpack.c.b16 %v92, %v92
  %v95 = vpack.c.b16 %v93, %v93
  %vm98 = vcmask 781312
  %99 = vst.msk [vmem:[%s3] sm:$0xf] %vm98, %v94
  %100 = vst.msk [vmem:[%s3 + $0x4] sm:$0xf] %vm98, %v95
  // Predicated region
  $region14: #{roberta_classifier_forward.13} parent=0 // pred_check
    _
  $region15: #{roberta_classifier_forward.13} parent=0 // pred_check_branch
    %102 = sbr.rel (0) target = $region17
  $region16: #{roberta_classifier_forward.13} parent=0 // pred_region
    _
  $region17: #{roberta_classifier_forward.13} parent=0 // pred_fallthru
    _
  // Predicated region
  $region18: #{roberta_classifier_forward.13} parent=0 // pred_check
    _
  $region19: #{roberta_classifier_forward.13} parent=0 // pred_check_branch
    %104 = sbr.rel (0) target = $region21
  $region20: #{roberta_classifier_forward.13} parent=0 // pred_region
    _
  $region21: #{roberta_classifier_forward.13} parent=0 // pred_fallthru
    _

// kernel: roberta_classifier_forward.12
$region0: #{roberta_classifier_forward.12}
  #allocation0 [shape = 'u32[]', space=smem, size = 0x4, offset = 0x4, fixed_abs, tag = 'smem constant byte address 0x4 - core index']
  #allocation1 [shape = 'u32[144,128]{1,0:T(1,128)}', space=vmem, size = 0x12000, scoped, tag = 'internal scratch']
  %s0 = inlined_call_operand.vmem [shape: f32[16,32], index: 0, kind: input, shape index: {}]
  %s1 = inlined_call_operand.vmem [shape: f32[1,32], index: 1, kind: input, shape index: {}]
  %s2 = inlined_call_operand.vmem [shape: f32[1,32], index: 2, kind: input, shape index: {}]
  %s3 = inlined_call_operand.vmem [shape: bf16[16,32], index: 3, kind: output, shape index: {}]
  %s4 = sld [smem:[#allocation0]]
  $region22: #{roberta_classifier_forward.12} parent=0
    _
  %s6 = ssub.s32 1, %s4
  %s7 = scalar_select 0, %s6, %s4
  // Predicated region
  $region2: #{roberta_classifier_forward.12} parent=0 // pred_check
    _
  $region3: #{roberta_classifier_forward.12} parent=0 // pred_check_branch
    %9 = sbr.rel (0) target = $region5
  $region4: #{roberta_classifier_forward.12} parent=0 // pred_region
    _
  $region5: #{roberta_classifier_forward.12} parent=0 // pred_fallthru
    _
  // Predicated region
  $region6: #{roberta_classifier_forward.12} parent=0 // pred_check
    _
  $region7: #{roberta_classifier_forward.12} parent=0 // pred_check_branch
    %11 = sbr.rel (0) target = $region9
  $region8: #{roberta_classifier_forward.12} parent=0 // pred_region
    _
  $region9: #{roberta_classifier_forward.12} parent=0 // pred_fallthru
    _
  // Predicated region
  $region10: #{roberta_classifier_forward.12} parent=0 // pred_check
    _
  $region11: #{roberta_classifier_forward.12} parent=0 // pred_check_branch
    %13 = sbr.rel (0) target = $region13
  $region12: #{roberta_classifier_forward.12} parent=0 // pred_region
    _
  $region13: #{roberta_classifier_forward.12} parent=0 // pred_fallthru
    _
  %v14 = vld [vmem:[%s0] sm:$0xff]
  %v15 = vld [vmem:[%s0 + $0x8] sm:$0xff]
  %vm16 = vcmask 261120
  %v17 = vsel %vm16, %v14, 0.0
  %18 = vadd.xlane.f32.xlu0 %v17
  %v19 = vpop.xlane.xlu0 %18
  %v20 = vsel %vm16, %v15, 0.0
  %21 = vadd.xlane.f32.xlu0 %v20
  %v22 = vpop.xlane.xlu0 %21
  %v23 = vrcp.pop 32.0
  %v24 = vmul.f32 %v19, %v23
  %v25 = vmul.f32 %v22, %v23
  %v26 = vsub.f32 %v14, %v24
  %v27 = vsub.f32 %v15, %v25
  %v28 = vmul.f32 %v26, %v26
  %v29 = vmul.f32 %v27, %v27
  %v30 = vsel %vm16, %v28, 0.0
  %31 = vadd.xlane.f32.xlu0 %v30
  %v32 = vpop.xlane.xlu0 %31
  %v33 = vsel %vm16, %v29, 0.0
  %34 = vadd.xlane.f32.xlu0 %v33
  %v35 = vpop.xlane.xlu0 %34
  %v36 = vmul.f32 %v32, %v23
  %v37 = vmul.f32 %v35, %v23
  %v38 = vadd.f32 %v36, 1e-05
  %v39 = vadd.f32 %v37, 1e-05
  %v40 = vrsqrt.pop %v38
  %v41 = vrsqrt.pop %v39
  %v42 = vmul.f32 %v26, %v40
  %v43 = vmul.f32 %v27, %v41
  %v44 = vld [vmem:[%s1] sm:$0x1]
  %v46 = vlaneseq
  %v47 = vshrl.u32 %v46, 7
  %v48 = vsub.s32 0, %v47
  %v49 = vrot.slane %v44, %v48
  %v51 = vmul.f32 %v42, %v49
  %v52 = vmul.f32 %v43, %v49
  %v53 = vld [vmem:[%s2] sm:$0x1]
  %v55 = vlaneseq
  %v56 = vshrl.u32 %v55, 7
  %v57 = vsub.s32 0, %v56
  %v58 = vrot.slane %v53, %v57
  %v60 = vadd.f32 %v51, %v58
  %v61 = vadd.f32 %v52, %v58
  %v62 = vpack.c.bf16 %v61, %v60
  %v64 = vunpack.c.l.b16 %v62
  %v65 = vunpack.c.h.b16 %v62
  %v66 = vpack.c.b16 %v64, %v64
  %v67 = vpack.c.b16 %v65, %v65
  %vm70 = vcmask 257024
  %71 = vst.msk [vmem:[%s3] sm:$0xf] %vm70, %v66
  %72 = vst.msk [vmem:[%s3 + $0x4] sm:$0xf] %vm70, %v67
  // Predicated region
  $region14: #{roberta_classifier_forward.12} parent=0 // pred_check
    _
  $region15: #{roberta_classifier_forward.12} parent=0 // pred_check_branch
    %74 = sbr.rel (0) target = $region17
  $region16: #{roberta_classifier_forward.12} parent=0 // pred_region
    _
  $region17: #{roberta_classifier_forward.12} parent=0 // pred_fallthru
    _
  // Predicated region
  $region18: #{roberta_classifier_forward.12} parent=0 // pred_check
    _
  $region19: #{roberta_classifier_forward.12} parent=0 // pred_check_branch
    %76 = sbr.rel (0) target = $region21
  $region20: #{roberta_classifier_forward.12} parent=0 // pred_region
    _
  $region21: #{roberta_classifier_forward.12} parent=0 // pred_fallthru
    _

// kernel: roberta_classifier_forward.14
$region0: #{roberta_classifier_forward.14}
  #allocation0 [shape = 'u32[]', space=smem, size = 0x4, offset = 0x4, fixed_abs, tag = 'smem constant byte address 0x4 - core index']
  #allocation1 [shape = 'u32[144,128]{1,0:T(1,128)}', space=vmem, size = 0x12000, scoped, tag = 'internal scratch']
  %s0 = inlined_call_operand.vmem [shape: bf16[2,8,96], index: 0, kind: input, shape index: {}]
  %s1 = inlined_call_operand.vmem [shape: f32[2,1,8], index: 1, kind: input, shape index: {}]
  %s2 = inlined_call_operand.vmem [shape: bf16[2,8,32], index: 2, kind: output, shape index: {}]
  %s3 = sld [smem:[#allocation0]]
  $region41: #{roberta_classifier_forward.14} parent=0
    _
  %s5 = ssub.s32 1, %s3
  %s6 = scalar_select 0, %s5, %s3
  loop: start=0, step=1, limit=4
  $region2: #{roberta_classifier_forward.14} parent=0 // loop_pre_header
    _
  $region3: #{roberta_classifier_forward.14} parent=0 // loop_header
    %s8 = sphi 0, %s12
    %p9 = scmp.ge.s32.totalorder %s8, 4
    %s18 = sphi 0, %s20
    %s21 = sphi 0, %s18
    %s22 = sphi 0, %s21
    %s38 = sphi 0, %s22
    %s44 = sphi 0, %s46
    %s47 = sphi 0, %s44
    %s48 = sphi 0, %s47
    %s64 = sphi 0, %s48
    %s70 = sphi 0, %s72
    %s73 = sphi 0, %s70
    %s74 = sphi 0, %s73
    %s90 = sphi 0, %s74
  $region4: #{roberta_classifier_forward.14} parent=0 // loop_header_branch
    %11 = sbr.rel (%p9) target = $region8
  $region5: #{roberta_classifier_forward.14} parent=0 // loop_body
    %s13 = ssub.s32 %s8, 1
    %s14 = ssub.s32 %s8, 2
    %s15 = sadd.s32 %s8, 1
    %s16 = ssub.s32 %s8, %s15
    %p17 = scmp.eq.s32.totalorder %s16, 0
    %s19 = sadd.s32 %s18, 1
    %s20 = scalar_select %p17, %s18, %s19
    %p23 = pneg %p17
    %p24 = scmp.eq.s32.totalorder %s8, 1
    %p25 = por %p23, %p24
    %p26 = scmp.ne.s32.totalorder %s18, %s21
    %p27 = scmp.eq.s32.totalorder %s8, 0
    %p28 = por %p26, %p27
    %p29 = scmp.ne.s32.totalorder %s18, %s21
    %p30 = scmp.eq.s32.totalorder %s13, 1
    %p31 = por %p29, %p30
    %p32 = scmp.ne.s32.totalorder %s21, %s22
    %p33 = scmp.eq.s32.totalorder %s13, 0
    %p34 = por %p32, %p33
    %p35 = scmp.ne.s32.totalorder %s21, %s22
    %p36 = scmp.eq.s32.totalorder %s14, 1
    %p37 = por %p35, %p36
    %p39 = scmp.ne.s32.totalorder %s22, %s38
    %p40 = scmp.eq.s32.totalorder %s14, 0
    %p41 = por %p39, %p40
    %s42 = ssub.s32 %s8, %s15
    %p43 = scmp.eq.s32.totalorder %s42, 0
    %s45 = sadd.s32 %s44, 1
    %s46 = scalar_select %p43, %s44, %s45
    %p49 = pneg %p43
    %p50 = scmp.eq.s32.totalorder %s8, 1
    %p51 = por %p49, %p50
    %p52 = scmp.ne.s32.totalorder %s44, %s47
    %p53 = scmp.eq.s32.totalorder %s8, 0
    %p54 = por %p52, %p53
    %p55 = scmp.ne.s32.totalorder %s44, %s47
    %p56 = scmp.eq.s32.totalorder %s13, 1
    %p57 = por %p55, %p56
    %p58 = scmp.ne.s32.totalorder %s47, %s48
    %p59 = scmp.eq.s32.totalorder %s13, 0
    %p60 = por %p58, %p59
    %p61 = scmp.ne.s32.totalorder %s47, %s48
    %p62 = scmp.eq.s32.totalorder %s14, 1
    %p63 = por %p61, %p62
    %p65 = scmp.ne.s32.totalorder %s48, %s64
    %p66 = scmp.eq.s32.totalorder %s14, 0
    %p67 = por %p65, %p66
    %s68 = ssub.s32 %s8, %s15
    %p69 = scmp.eq.s32.totalorder %s68, 0
    %s71 = sadd.s32 %s70, 1
    %s72 = scalar_select %p69, %s70, %s71
    %p75 = pneg %p69
    %p76 = scmp.eq.s32.totalorder %s8, 1
    %p77 = por %p75, %p76
    %p78 = scmp.ne.s32.totalorder %s70, %s73
    %p79 = scmp.eq.s32.totalorder %s8, 0
    %p80 = por %p78, %p79
    %p81 = scmp.ne.s32.totalorder %s70, %s73
    %p82 = scmp.eq.s32.totalorder %s13, 1
    %p83 = por %p81, %p82
    %p84 = scmp.ne.s32.totalorder %s73, %s74
    %p85 = scmp.eq.s32.totalorder %s13, 0
    %p86 = por %p84, %p85
    %p87 = scmp.ne.s32.totalorder %s73, %s74
    %p88 = scmp.eq.s32.totalorder %s14, 1
    %p89 = por %p87, %p88
    %p91 = scmp.ne.s32.totalorder %s74, %s90
    %p92 = scmp.eq.s32.totalorder %s14, 0
    %p93 = por %p91, %p92
    %p94 = scmp.le.s32.totalorder 1, %s8
    %p95 = scmp.lt.s32.totalorder %s8, 3
    %p96 = pnand %p94, %p95
    %p97 = pneg %p96
    // Predicated region
    $region9: #{roberta_classifier_forward.14} parent=5 // pred_check
      _
    $region10: #{roberta_classifier_forward.14} parent=5 // pred_check_branch
      %99 = sbr.rel (%p96) target = $region12
    $region11: #{roberta_classifier_forward.14} parent=5 // pred_region
      %s100 = ssub.s32 %s8, 1
    $region12: #{roberta_classifier_forward.14} parent=5 // pred_fallthru
      _
    %p101 = scmp.lt.s32.totalorder %s8, 2
    // Predicated region
    $region13: #{roberta_classifier_forward.14} parent=5 // pred_check
      %p102 = pneg %p101
    $region14: #{roberta_classifier_forward.14} parent=5 // pred_check_branch
      %104 = sbr.rel (%p102) target = $region16
    $region15: #{roberta_classifier_forward.14} parent=5 // pred_region
      // Predicated region
      $region17: #{roberta_classifier_forward.14} parent=15 // pred_check
        %p105 = pneg %p28
      $region18: #{roberta_classifier_forward.14} parent=15 // pred_check_branch
        %107 = sbr.rel (%p105) target = $region20
      $region19: #{roberta_classifier_forward.14} parent=15 // pred_region
        %p108 = scmp.lt.s32.totalorder %s8, 1
        %s109 = scalar_select %p108, %s8, 1
        %s110 = smul.addr %s109, 4
        %s111 = scalar_lea.vmem %s0, %s110
      $region20: #{roberta_classifier_forward.14} parent=15 // pred_fallthru
        _
      // Predicated region
      $region21: #{roberta_classifier_forward.14} parent=15 // pred_check
        %p112 = pneg %p54
      $region22: #{roberta_classifier_forward.14} parent=15 // pred_check_branch
        %114 = sbr.rel (%p112) target = $region24
      $region23: #{roberta_classifier_forward.14} parent=15 // pred_region
        %p115 = scmp.lt.s32.totalorder %s8, 1
        %s116 = scalar_select %p115, %s8, 1
        %s117 = scalar_lea.vmem %s1, %s116
      $region24: #{roberta_classifier_forward.14} parent=15 // pred_fallthru
        _
    $region16: #{roberta_classifier_forward.14} parent=5 // pred_fallthru
      _
    %p118 = scmp.le.s32.totalorder 1, %s8
    %p119 = scmp.lt.s32.totalorder %s8, 3
    %p120 = pnand %p118, %p119
    %p121 = pneg %p120
    // Predicated region
    $region25: #{roberta_classifier_forward.14} parent=5 // pred_check
      _
    $region26: #{roberta_classifier_forward.14} parent=5 // pred_check_branch
      %123 = sbr.rel (%p120) target = $region28
    $region27: #{roberta_classifier_forward.14} parent=5 // pred_region
      %s124 = ssub.s32 %s8, 1
      %p125 = scmp.lt.s32.totalorder %s13, 1
      %s126 = scalar_select %p125, %s13, 1
      %s127 = smul.addr %s126, 4
      %s128 = scalar_lea.vmem %s0, %s127
      %p129 = pneg %p34
      %p130 = pneg %p31
      %p131 = scmp.lt.s32.totalorder %s13, 1
      %s132 = scalar_select %p131, %s13, 1
      %s133 = scalar_lea.vmem %s1, %s132
      %p134 = pneg %p60
      %p135 = pneg %p57
      %p136 = pneg %p86
      %p137 = pneg %p83
      %p138 = scmp.lt.s32.totalorder %s13, 1
      %s139 = scalar_select %p138, %s13, 1
      %s140 = smul.addr %s139, 4
      %s141 = scalar_lea.vmem %s2, %s140
      %p142 = scmp.lt.s32.totalorder %s13, 1
      %s143 = scalar_select %p142, %s13, 1
      %s144 = smul.addr %s143, 4
      %s145 = scalar_lea.vmem %s0, %s144
      %p146 = scmp.lt.s32.totalorder %s13, 1
      %s147 = scalar_select %p146, %s13, 1
      %s148 = scalar_lea.vmem %s1, %s147
      %p149 = scmp.lt.s32.totalorder %s13, 1
      %s150 = scalar_select %p149, %s13, 1
      %s151 = smul.addr %s150, 4
      %s152 = scalar_lea.vmem %s2, %s151
      %v154 = vld [vmem:[%s148] sm:$0x1]
      %v155 = vld [vmem:[%s145] sm:$0xf]
      %v157 = vunpack.c.l.b16 %v155
      %v158 = vpack.c.b16 %v157, %v157
      %159 = vrot.lane.b32.xlu0 %v158, 96
      %v160 = vpop.permute.xlu0 %159
      %vm161 = vcmask 130048
      %v163 = vsel %vm161, %v155, 0
      %v166 = vsel %vm161, %v160, 0
      %168 = vmatprep.subr.bf16.mxu0 0
      %169 = vmatpush1.bf16.xpose.msra.mxu0 0
      %170 = vmatprep.subr.bf16.mxu0 0
      %171 = vmatpush1.bf16.xpose.msra.mxu0 0
      %172 = vmatprep.subr.bf16.mxu0 0
      %173 = vmatpush1.bf16.xpose.msra.mxu0 0
      %174 = vmatprep.subr.bf16.mxu0 0
      %175 = vmatpush1.bf16.xpose.msra.mxu0 0
      %176 = vmatprep.subr.bf16.mxu0 0
      %177 = vmatpush1.bf16.xpose.msra.mxu0 0
      %178 = vmatprep.subr.bf16.mxu0 0
      %179 = vmatpush1.bf16.xpose.msra.mxu0 0
      %180 = vmatprep.subr.bf16.mxu0 0
      %181 = vmatpush1.bf16.xpose.msra.mxu0 0
      %182 = vmatprep.subr.bf16.mxu0 0
      %183 = vmatpush1.bf16.xpose.msra.mxu0 %v166
      %184 = vmatprep.subr.bf16.mxu0 0
      %185 = vmatpush2.bf16.xpose.msra.mxu0 0
      %186 = vmatprep.subr.bf16.mxu0 0
      %187 = vmatpush2.bf16.xpose.msra.mxu0 0
      %188 = vmatprep.subr.bf16.mxu0 0
      %189 = vmatpush2.bf16.xpose.msra.mxu0 0
      %190 = vmatprep.subr.bf16.mxu0 0
      %191 = vmatpush2.bf16.xpose.msra.mxu0 0
      %192 = vmatprep.subr.bf16.mxu0 0
      %193 = vmatpush2.bf16.xpose.msra.mxu0 0
      %194 = vmatprep.subr.bf16.mxu0 0
      %195 = vmatpush2.bf16.xpose.msra.mxu0 0
      %196 = vmatprep.subr.bf16.mxu0 0
      %197 = vmatpush2.bf16.xpose.msra.mxu0 0
      %198 = vmatprep.subr.bf16.mxu0 0
      %199 = vmatpush2.bf16.xpose.msra.mxu0 0
      %200 = vmatprep.mubr.bf16.mxu0 0
      %201 = vmatmul.mubr.bf16.gmra.mxu0 %v163
      %v202 = vpop.f32.mrf.mxu0
      %v203 = vadd.f32 0.0, %v202
      %v204 = vpop.f32.mrf.mxu0
      %v205 = vpop.f32.mrf.mxu0
      %v206 = vpop.f32.mrf.mxu0
      %207 = vdwg.mxu0
      %v208 = vmul.f32 %v203, 0.25
      %v210 = vlaneseq
      %v211 = vshrl.u32 %v210, 7
      %v212 = vsub.s32 0, %v211
      %v213 = vrot.slane %v154, %v212
      %v215 = vadd.f32 %v208, %v213
      %vm216 = vcmask 64512
      %v217 = vsel %vm216, %v215, -inf
      %218 = vmax.xlane.f32.xlu0 %v217
      %v219 = vpop.xlane.xlu0 %218
      %v220 = vsub.f32 %v215, %v219
      %v221 = vmul.f32 %v220, 1.442695
      %v222 = vpow.pop %v221
      %v223 = vsel %vm216, %v222, 0.0
      %224 = vadd.xlane.f32.xlu0 %v223
      %v225 = vpop.xlane.xlu0 %224
      %v226 = vrcp.pop %v225
      %v227 = vmul.f32 %v222, %v226
      %v228 = vpack.c.bf16 %v227, %v227
      %229 = vrot.lane.b32.xlu0 %v158, 64
      %v230 = vpop.permute.xlu0 %229
      %v232 = vsel %vm216, %v228, 0
      %vm234 = vcmask 1043456
      %v236 = vsel %vm234, %v230, 0
      %238 = vmatprep.subr.bf16.mxu0 0
      %239 = vmatpush1.bf16.msra.mxu0 0
      %240 = vmatprep.subr.bf16.mxu0 0
      %241 = vmatpush1.bf16.msra.mxu0 0
      %242 = vmatprep.subr.bf16.mxu0 0
      %243 = vmatpush1.bf16.msra.mxu0 0
      %244 = vmatprep.subr.bf16.mxu0 0
      %245 = vmatpush1.bf16.msra.mxu0 0
      %246 = vmatprep.subr.bf16.mxu0 0
      %247 = vmatpush1.bf16.msra.mxu0 0
      %248 = vmatprep.subr.bf16.mxu0 0
      %249 = vmatpush1.bf16.msra.mxu0 0
      %250 = vmatprep.subr.bf16.mxu0 0
      %251 = vmatpush1.bf16.msra.mxu0 0
      %252 = vmatprep.subr.bf16.mxu0 0
      %253 = vmatpush1.bf16.msra.mxu0 %v236
      %254 = vmatprep.subr.bf16.mxu0 0
      %255 = vmatpush2.bf16.msra.mxu0 0
      %256 = vmatprep.subr.bf16.mxu0 0
      %257 = vmatpush2.bf16.msra.mxu0 0
      %258 = vmatprep.subr.bf16.mxu0 0
      %259 = vmatpush2.bf16.msra.mxu0 0
      %260 = vmatprep.subr.bf16.mxu0 0
      %261 = vmatpush2.bf16.msra.mxu0 0
      %262 = vmatprep.subr.bf16.mxu0 0
      %263 = vmatpush2.bf16.msra.mxu0 0
      %264 = vmatprep.subr.bf16.mxu0 0
      %265 = vmatpush2.bf16.msra.mxu0 0
      %266 = vmatprep.subr.bf16.mxu0 0
      %267 = vmatpush2.bf16.msra.mxu0 0
      %268 = vmatprep.subr.bf16.mxu0 0
      %269 = vmatpush2.bf16.msra.mxu0 0
      %270 = vmatprep.mubr.bf16.mxu0 0
      %271 = vmatmul.mubr.bf16.gmra.mxu0 %v232
      %v272 = vpop.f32.mrf.mxu0
      %v273 = vadd.f32 0.0, %v272
      %v274 = vpop.f32.mrf.mxu0
      %v275 = vpop.f32.mrf.mxu0
      %v276 = vpop.f32.mrf.mxu0
      %277 = vdwg.mxu0
      %278 = vrot.lane.b32.xlu0 %v158, 112
      %v279 = vpop.permute.xlu0 %278
      %280 = vrot.lane.b32.xlu0 %v158, 80
      %v281 = vpop.permute.xlu0 %280
      %v283 = vsel %vm161, %v279, 0
      %v286 = vsel %vm161, %v281, 0
      %288 = vmatprep.subr.bf16.mxu0 0
      %289 = vmatpush1.bf16.xpose.msra.mxu0 0
      %290 = vmatprep.subr.bf16.mxu0 0
      %291 = vmatpush1.bf16.xpose.msra.mxu0 0
      %292 = vmatprep.subr.bf16.mxu0 0
      %293 = vmatpush1.bf16.xpose.msra.mxu0 0
      %294 = vmatprep.subr.bf16.mxu0 0
      %295 = vmatpush1.bf16.xpose.msra.mxu0 0
      %296 = vmatprep.subr.bf16.mxu0 0
      %297 = vmatpush1.bf16.xpose.msra.mxu0 0
      %298 = vmatprep.subr.bf16.mxu0 0
      %299 = vmatpush1.bf16.xpose.msra.mxu0 0
      %300 = vmatprep.subr.bf16.mxu0 0
      %301 = vmatpush1.bf16.xpose.msra.mxu0 0
      %302 = vmatprep.subr.bf16.mxu0 0
      %303 = vmatpush1.bf16.xpose.msra.mxu0 %v286
      %304 = vmatprep.subr.bf16.mxu0 0
      %305 = vmatpush2.bf16.xpose.msra.mxu0 0
      %306 = vmatprep.subr.bf16.mxu0 0
      %307 = vmatpush2.bf16.xpose.msra.mxu0 0
      %308 = vmatprep.subr.bf16.mxu0 0
      %309 = vmatpush2.bf16.xpose.msra.mxu0 0
      %310 = vmatprep.subr.bf16.mxu0 0
      %311 = vmatpush2.bf16.xpose.msra.mxu0 0
      %312 = vmatprep.subr.bf16.mxu0 0
      %313 = vmatpush2.bf16.xpose.msra.mxu0 0
      %314 = vmatprep.subr.bf16.mxu0 0
      %315 = vmatpush2.bf16.xpose.msra.mxu0 0
      %316 = vmatprep.subr.bf16.mxu0 0
      %317 = vmatpush2.bf16.xpose.msra.mxu0 0
      %318 = vmatprep.subr.bf16.mxu0 0
      %319 = vmatpush2.bf16.xpose.msra.mxu0 0
      %320 = vmatprep.mubr.bf16.mxu0 0
      %321 = vmatmul.mubr.bf16.gmra.mxu0 %v283
      %v322 = vpop.f32.mrf.mxu0
      %v323 = vadd.f32 0.0, %v322
      %v324 = vpop.f32.mrf.mxu0
      %v325 = vpop.f32.mrf.mxu0
      %v326 = vpop.f32.mrf.mxu0
      %327 = vdwg.mxu0
      %v328 = vmul.f32 %v323, 0.25
      %v329 = vadd.f32 %v328, %v213
      %v330 = vsel %vm216, %v329, -inf
      %331 = vmax.xlane.f32.xlu0 %v330
      %v332 = vpop.xlane.xlu0 %331
      %v333 = vsub.f32 %v329, %v332
      %v334 = vmul.f32 %v333, 1.442695
      %v335 = vpow.pop %v334
      %v336 = vsel %vm216, %v335, 0.0
      %337 = vadd.xlane.f32.xlu0 %v336
      %v338 = vpop.xlane.xlu0 %337
      %v339 = vrcp.pop %v338
      %v340 = vmul.f32 %v335, %v339
      %v341 = vpack.c.bf16 %v340, %v340
      %342 = vrot.lane.b32.xlu0 %v158, 48
      %v343 = vpop.permute.xlu0 %342
      %v345 = vsel %vm216, %v341, 0
      %v348 = vsel %vm234, %v343, 0
      %350 = vmatprep.subr.bf16.mxu0 0
      %351 = vmatpush1.bf16.msra.mxu0 0
      %352 = vmatprep.subr.bf16.mxu0 0
      %353 = vmatpush1.bf16.msra.mxu0 0
      %354 = vmatprep.subr.bf16.mxu0 0
      %355 = vmatpush1.bf16.msra.mxu0 0
      %356 = vmatprep.subr.bf16.mxu0 0
      %357 = vmatpush1.bf16.msra.mxu0 0
      %358 = vmatprep.subr.bf16.mxu0 0
      %359 = vmatpush1.bf16.msra.mxu0 0
      %360 = vmatprep.subr.bf16.mxu0 0
      %361 = vmatpush1.bf16.msra.mxu0 0
      %362 = vmatprep.subr.bf16.mxu0 0
      %363 = vmatpush1.bf16.msra.mxu0 0
      %364 = vmatprep.subr.bf16.mxu0 0
      %365 = vmatpush1.bf16.msra.mxu0 %v348
      %366 = vmatprep.subr.bf16.mxu0 0
      %367 = vmatpush2.bf16.msra.mxu0 0
      %368 = vmatprep.subr.bf16.mxu0 0
      %369 = vmatpush2.bf16.msra.mxu0 0
      %370 = vmatprep.subr.bf16.mxu0 0
      %371 = vmatpush2.bf16.msra.mxu0 0
      %372 = vmatprep.subr.bf16.mxu0 0
      %373 = vmatpush2.bf16.msra.mxu0 0
      %374 = vmatprep.subr.bf16.mxu0 0
      %375 = vmatpush2.bf16.msra.mxu0 0
      %376 = vmatprep.subr.bf16.mxu0 0
      %377 = vmatpush2.bf16.msra.mxu0 0
      %378 = vmatprep.subr.bf16.mxu0 0
      %379 = vmatpush2.bf16.msra.mxu0 0
      %380 = vmatprep.subr.bf16.mxu0 0
      %381 = vmatpush2.bf16.msra.mxu0 0
      %382 = vmatprep.mubr.bf16.mxu0 0
      %383 = vmatmul.mubr.bf16.gmra.mxu0 %v345
      %v384 = vpop.f32.mrf.mxu0
      %v385 = vadd.f32 0.0, %v384
      %v386 = vpop.f32.mrf.mxu0
      %v387 = vpop.f32.mrf.mxu0
      %v388 = vpop.f32.mrf.mxu0
      %389 = vdwg.mxu0
      %391 = vrot.lane.b32.xlu0 %v385, 16
      %v392 = vpop.permute.xlu0 %391
      %v394 = vsel %vm161, %v273, %v392
      %v395 = vpack.c.bf16 %v394, %v394
      %vm396 = vcmask 257024
      %397 = vst.msk [vmem:[%s152] sm:$0xf] %vm396, %v395
      %p398 = scmp.lt.s32.totalorder %s13, 1
      %s399 = scalar_select %p398, %s13, 1
      %s400 = smul.addr %s399, 4
      %s401 = scalar_lea.vmem %s2, %s400
      // Predicated region
      $region29: #{roberta_classifier_forward.14} parent=27 // pred_check
        %p402 = pneg %p83
      $region30: #{roberta_classifier_forward.14} parent=27 // pred_check_branch
        %404 = sbr.rel (%p402) target = $region32
      $region31: #{roberta_classifier_forward.14} parent=27 // pred_region
        _
      $region32: #{roberta_classifier_forward.14} parent=27 // pred_fallthru
        _
    $region28: #{roberta_classifier_forward.14} parent=5 // pred_fallthru
      _
    %p405 = scmp.le.s32.totalorder 2, %s8
    // Predicated region
    $region33: #{roberta_classifier_forward.14} parent=5 // pred_check
      %p406 = pneg %p405
    $region34: #{roberta_classifier_forward.14} parent=5 // pred_check_branch
      %408 = sbr.rel (%p406) target = $region36
    $region35: #{roberta_classifier_forward.14} parent=5 // pred_region
      %s409 = ssub.s32 %s8, 2
      // Predicated region
      $region37: #{roberta_classifier_forward.14} parent=35 // pred_check
        %p410 = pneg %p89
      $region38: #{roberta_classifier_forward.14} parent=35 // pred_check_branch
        %412 = sbr.rel (%p410) target = $region40
      $region39: #{roberta_classifier_forward.14} parent=35 // pred_region
        %p413 = scmp.lt.s32.totalorder %s14, 1
        %s414 = scalar_select %p413, %s14, 1
        %s415 = smul.addr %s414, 4
        %s416 = scalar_lea.vmem %s2, %s415
      $region40: #{roberta_classifier_forward.14} parent=35 // pred_fallthru
        _
    $region36: #{roberta_classifier_forward.14} parent=5 // pred_fallthru
      _
  $region6: #{roberta_classifier_forward.14} parent=0 // loop_footer
    %s12 = sadd.s32 1, %s8
  $region7: #{roberta_classifier_forward.14} parent=0 // loop_footer_branch
    %7 = sbr.rel target = $region3
  $region8: #{roberta_classifier_forward.14} parent=0 // loop_exit
    _

// kernel: roberta_classifier_forward.16
$region0: #{roberta_classifier_forward.16}
  #allocation0 [shape = 'u32[]', space=smem, size = 0x4, offset = 0x4, fixed_abs, tag = 'smem constant byte address 0x4 - core index']
  #allocation1 [shape = 'u32[144,128]{1,0:T(1,128)}', space=vmem, size = 0x12000, scoped, tag = 'internal scratch']
  %s0 = inlined_call_operand.vmem [shape: bf16[16,32], index: 0, kind: input, shape index: {}]
  %s1 = inlined_call_operand.vmem [shape: bf16[32,64], index: 1, kind: input, shape index: {}]
  %s2 = inlined_call_operand.vmem [shape: f32[1,64], index: 2, kind: input, shape index: {}]
  %s3 = inlined_call_operand.vmem [shape: bf16[16,64], index: 3, kind: output, shape index: {}]
  %s4 = sld [smem:[#allocation0]]
  $region22: #{roberta_classifier_forward.16} parent=0
    _
  %s6 = ssub.s32 1, %s4
  %s7 = scalar_select 0, %s6, %s4
  // Predicated region
  $region2: #{roberta_classifier_forward.16} parent=0 // pred_check
    _
  $region3: #{roberta_classifier_forward.16} parent=0 // pred_check_branch
    %9 = sbr.rel (0) target = $region5
  $region4: #{roberta_classifier_forward.16} parent=0 // pred_region
    _
  $region5: #{roberta_classifier_forward.16} parent=0 // pred_fallthru
    _
  // Predicated region
  $region6: #{roberta_classifier_forward.16} parent=0 // pred_check
    _
  $region7: #{roberta_classifier_forward.16} parent=0 // pred_check_branch
    %11 = sbr.rel (0) target = $region9
  $region8: #{roberta_classifier_forward.16} parent=0 // pred_region
    _
  $region9: #{roberta_classifier_forward.16} parent=0 // pred_fallthru
    _
  // Predicated region
  $region10: #{roberta_classifier_forward.16} parent=0 // pred_check
    _
  $region11: #{roberta_classifier_forward.16} parent=0 // pred_check_branch
    %13 = sbr.rel (0) target = $region13
  $region12: #{roberta_classifier_forward.16} parent=0 // pred_region
    _
  $region13: #{roberta_classifier_forward.16} parent=0 // pred_fallthru
    _
  %v15 = vld [vmem:[%s0] sm:$0xf]
  %v16 = vld [vmem:[%s0 + $0x4] sm:$0xf]
  %v17 = vld [vmem:[%s1] sm:$0xf]
  %v18 = vld [vmem:[%s1 + $0x4] sm:$0xf]
  %v19 = vld [vmem:[%s1 + $0x8] sm:$0xf]
  %v20 = vld [vmem:[%s1 + $0xc] sm:$0xf]
  %v21 = vld [vmem:[%s2] sm:$0x1]
  %v23 = vlaneseq
  %v24 = vshrl.u32 %v23, 7
  %v25 = vsub.s32 0, %v24
  %v26 = vrot.slane %v21, %v25
  %v30 = vunpack.c.l.b16 %v15
  %v31 = vunpack.c.l.b16 %v16
  %v32 = vpack.c.b16 %v31, %v30
  %v37 = vunpack.c.l.b16 %v17
  %v38 = vunpack.c.l.b16 %v18
  %v39 = vunpack.c.l.b16 %v19
  %v40 = vunpack.c.l.b16 %v20
  %v41 = vpack.c.b16 %v38, %v37
  %v42 = vpack.c.b16 %v40, %v39
  %vm45 = vcmask 261120
  %v47 = vsel %vm45, %v32, 0
  %49 = vmatprep.subr.bf16.mxu0 0
  %50 = vmatpush1.bf16.msra.mxu0 0
  %51 = vmatprep.subr.bf16.mxu0 0
  %52 = vmatpush1.bf16.msra.mxu0 0
  %53 = vmatprep.subr.bf16.mxu0 0
  %54 = vmatpush1.bf16.msra.mxu0 0
  %55 = vmatprep.subr.bf16.mxu0 0
  %56 = vmatpush1.bf16.msra.mxu0 0
  %57 = vmatprep.subr.bf16.mxu0 0
  %58 = vmatpush1.bf16.msra.mxu0 0
  %59 = vmatprep.subr.bf16.mxu0 0
  %60 = vmatpush1.bf16.msra.mxu0 0
  %61 = vmatprep.subr.bf16.mxu0 0
  %62 = vmatpush1.bf16.msra.mxu0 %v42
  %63 = vmatprep.subr.bf16.mxu0 0
  %64 = vmatpush1.bf16.msra.mxu0 %v41
  %65 = vmatprep.subr.bf16.mxu0 0
  %66 = vmatpush2.bf16.msra.mxu0 0
  %67 = vmatprep.subr.bf16.mxu0 0
  %68 = vmatpush2.bf16.msra.mxu0 0
  %69 = vmatprep.subr.bf16.mxu0 0
  %70 = vmatpush2.bf16.msra.mxu0 0
  %71 = vmatprep.subr.bf16.mxu0 0
  %72 = vmatpush2.bf16.msra.mxu0 0
  %73 = vmatprep.subr.bf16.mxu0 0
  %74 = vmatpush2.bf16.msra.mxu0 0
  %75 = vmatprep.subr.bf16.mxu0 0
  %76 = vmatpush2.bf16.msra.mxu0 0
  %77 = vmatprep.subr.bf16.mxu0 0
  %78 = vmatpush2.bf16.msra.mxu0 0
  %79 = vmatprep.subr.bf16.mxu0 0
  %80 = vmatpush2.bf16.msra.mxu0 0
  %81 = vmatprep.mubr.bf16.mxu0 0
  %82 = vmatmul.mubr.bf16.gmra.mxu0 %v47
  %v83 = vpop.f32.mrf.mxu0
  %v84 = vadd.f32 %v26, %v83
  %v85 = vpop.f32.mrf.mxu0
  %v86 = vpop.f32.mrf.mxu0
  %v87 = vadd.f32 %v26, %v86
  %v88 = vpop.f32.mrf.mxu0
  %89 = vdwg.mxu0
  %v90 = vmul.f32 %v84, 0.5
  %v91 = vmul.f32 %v87, 0.5
  %v92 = vmul.f32 %v84, 0.044715
  %v93 = vmul.f32 %v87, 0.044715
  %v94 = vmul.f32 %v92, %v84
  %v95 = vmul.f32 %v93, %v87
  %v96 = vmul.f32 %v94, %v84
  %v97 = vmul.f32 %v95, %v87
  %v98 = vadd.f32 %v84, %v96
  %v99 = vadd.f32 %v87, %v97
  %v100 = vmul.f32 %v98, 0.7978846
  %v101 = vmul.f32 %v99, 0.7978846
  %v102 = vtanh.pop %v100
  %v103 = vtanh.pop %v101
  %v104 = vadd.f32 %v102, 1.0
  %v105 = vadd.f32 %v103, 1.0
  %v106 = vmul.f32 %v90, %v104
  %v107 = vmul.f32 %v91, %v105
  %v108 = vpack.c.bf16 %v107, %v106
  %v110 = vunpack.c.l.b16 %v108
  %v111 = vunpack.c.h.b16 %v108
  %v112 = vpack.c.b16 %v110, %v110
  %v113 = vpack.c.b16 %v111, %v111
  %vm116 = vcmask 519168
  %117 = vst.msk [vmem:[%s3] sm:$0xf] %vm116, %v112
  %118 = vst.msk [vmem:[%s3 + $0x4] sm:$0xf] %vm116, %v113
  // Predicated region
  $region14: #{roberta_classifier_forward.16} parent=0 // pred_check
    _
  $region15: #{roberta_classifier_forward.16} parent=0 // pred_check_branch
    %120 = sbr.rel (0) target = $region17
  $region16: #{roberta_classifier_forward.16} parent=0 // pred_region
    _
  $region17: #{roberta_classifier_forward.16} parent=0 // pred_fallthru
    _
  // Predicated region
  $region18: #{roberta_classifier_forward.16} parent=0 // pred_check
    _
  $region19: #{roberta_classifier_forward.16} parent=0 // pred_check_branch
    %122 = sbr.rel (0) target = $region21
  $region20: #{roberta_classifier_forward.16} parent=0 // pred_region
    _
  $region21: #{roberta_classifier_forward.16} parent=0 // pred_fallthru
    _

// kernel: roberta_classifier_forward.17
$region0: #{roberta_classifier_forward.17}
  #allocation0 [shape = 'u32[]', space=smem, size = 0x4, offset = 0x4, fixed_abs, tag = 'smem constant byte address 0x4 - core index']
  #allocation1 [shape = 'u32[144,128]{1,0:T(1,128)}', space=vmem, size = 0x12000, scoped, tag = 'internal scratch']
  %s0 = inlined_call_operand.vmem [shape: bf16[16,64], index: 0, kind: input, shape index: {}]
  %s1 = inlined_call_operand.vmem [shape: bf16[64,32], index: 1, kind: input, shape index: {}]
  %s2 = inlined_call_operand.vmem [shape: f32[1,32], index: 2, kind: input, shape index: {}]
  %s3 = inlined_call_operand.vmem [shape: bf16[16,32], index: 3, kind: input, shape index: {}]
  %s4 = inlined_call_operand.vmem [shape: f32[1,32], index: 4, kind: input, shape index: {}]
  %s5 = inlined_call_operand.vmem [shape: f32[1,32], index: 5, kind: input, shape index: {}]
  %s6 = inlined_call_operand.vmem [shape: bf16[16,32], index: 6, kind: output, shape index: {}]
  %s7 = sld [smem:[#allocation0]]
  $region34: #{roberta_classifier_forward.17} parent=0
    _
  %s9 = ssub.s32 1, %s7
  %s10 = scalar_select 0, %s9, %s7
  // Predicated region
  $region2: #{roberta_classifier_forward.17} parent=0 // pred_check
    _
  $region3: #{roberta_classifier_forward.17} parent=0 // pred_check_branch
    %12 = sbr.rel (0) target = $region5
  $region4: #{roberta_classifier_forward.17} parent=0 // pred_region
    _
  $region5: #{roberta_classifier_forward.17} parent=0 // pred_fallthru
    _
  // Predicated region
  $region6: #{roberta_classifier_forward.17} parent=0 // pred_check
    _
  $region7: #{roberta_classifier_forward.17} parent=0 // pred_check_branch
    %14 = sbr.rel (0) target = $region9
  $region8: #{roberta_classifier_forward.17} parent=0 // pred_region
    _
  $region9: #{roberta_classifier_forward.17} parent=0 // pred_fallthru
    _
  // Predicated region
  $region10: #{roberta_classifier_forward.17} parent=0 // pred_check
    _
  $region11: #{roberta_classifier_forward.17} parent=0 // pred_check_branch
    %16 = sbr.rel (0) target = $region13
  $region12: #{roberta_classifier_forward.17} parent=0 // pred_region
    _
  $region13: #{roberta_classifier_forward.17} parent=0 // pred_fallthru
    _
  // Predicated region
  $region14: #{roberta_classifier_forward.17} parent=0 // pred_check
    _
  $region15: #{roberta_classifier_forward.17} parent=0 // pred_check_branch
    %18 = sbr.rel (0) target = $region17
  $region16: #{roberta_classifier_forward.17} parent=0 // pred_region
    _
  $region17: #{roberta_classifier_forward.17} parent=0 // pred_fallthru
    _
  // Predicated region
  $region18: #{roberta_classifier_forward.17} parent=0 // pred_check
    _
  $region19: #{roberta_classifier_forward.17} parent=0 // pred_check_branch
    %20 = sbr.rel (0) target = $region21
  $region20: #{roberta_classifier_forward.17} parent=0 // pred_region
    _
  $region21: #{roberta_classifier_forward.17} parent=0 // pred_fallthru
    _
  // Predicated region
  $region22: #{roberta_classifier_forward.17} parent=0 // pred_check
    _
  $region23: #{roberta_classifier_forward.17} parent=0 // pred_check_branch
    %22 = sbr.rel (0) target = $region25
  $region24: #{roberta_classifier_forward.17} parent=0 // pred_region
    _
  $region25: #{roberta_classifier_forward.17} parent=0 // pred_fallthru
    _
  %v24 = vld [vmem:[%s0] sm:$0xf]
  %v25 = vld [vmem:[%s0 + $0x4] sm:$0xf]
  %v26 = vld [vmem:[%s1] sm:$0xf]
  %v27 = vld [vmem:[%s1 + $0x4] sm:$0xf]
  %v28 = vld [vmem:[%s1 + $0x8] sm:$0xf]
  %v29 = vld [vmem:[%s1 + $0xc] sm:$0xf]
  %v30 = vld [vmem:[%s1 + $0x10] sm:$0xf]
  %v31 = vld [vmem:[%s1 + $0x14] sm:$0xf]
  %v32 = vld [vmem:[%s1 + $0x18] sm:$0xf]
  %v33 = vld [vmem:[%s1 + $0x1c] sm:$0xf]
  %v34 = vld [vmem:[%s2] sm:$0x1]
  %v36 = vlaneseq
  %v37 = vshrl.u32 %v36, 7
  %v38 = vsub.s32 0, %v37
  %v39 = vrot.slane %v34, %v38
  %v43 = vunpack.c.l.b16 %v24
  %v44 = vunpack.c.l.b16 %v25
  %v45 = vpack.c.b16 %v44, %v43
  %v54 = vunpack.c.l.b16 %v26
  %v55 = vunpack.c.l.b16 %v27
  %v56 = vunpack.c.l.b16 %v28
  %v57 = vunpack.c.l.b16 %v29
  %v58 = vunpack.c.l.b16 %v30
  %v59 = vunpack.c.l.b16 %v31
  %v60 = vunpack.c.l.b16 %v32
  %v61 = vunpack.c.l.b16 %v33
  %v62 = vpack.c.b16 %v55, %v54
  %v63 = vpack.c.b16 %v57, %v56
  %v64 = vpack.c.b16 %v59, %v58
  %v65 = vpack.c.b16 %v61, %v60
  %vm70 = vcmask 523264
  %v72 = vsel %vm70, %v45, 0
  %74 = vmatprep.subr.bf16.mxu0 0
  %75 = vmatpush1.bf16.msra.mxu0 0
  %76 = vmatprep.subr.bf16.mxu0 0
  %77 = vmatpush1.bf16.msra.mxu0 0
  %78 = vmatprep.subr.bf16.mxu0 0
  %79 = vmatpush1.bf16.msra.mxu0 0
  %80 = vmatprep.subr.bf16.mxu0 0
  %81 = vmatpush1.bf16.msra.mxu0 0
  %82 = vmatprep.subr.bf16.mxu0 0
  %83 = vmatpush1.bf16.msra.mxu0 %v65
  %84 = vmatprep.subr.bf16.mxu0 0
  %85 = vmatpush1.bf16.msra.mxu0 %v64
  %86 = vmatprep.subr.bf16.mxu0 0
  %87 = vmatpush1.bf16.msra.mxu0 %v63
  %88 = vmatprep.subr.bf16.mxu0 0
  %89 = vmatpush1.bf16.msra.mxu0 %v62
  %90 = vmatprep.subr.bf16.mxu0 0
  %91 = vmatpush2.bf16.msra.mxu0 0
  %92 = vmatprep.subr.bf16.mxu0 0
  %93 = vmatpush2.bf16.msra.mxu0 0
  %94 = vmatprep.subr.bf16.mxu0 0
  %95 = vmatpush2.bf16.msra.mxu0 0
  %96 = vmatprep.subr.bf16.mxu0 0
  %97 = vmatpush2.bf16.msra.mxu0 0
  %98 = vmatprep.subr.bf16.mxu0 0
  %99 = vmatpush2.bf16.msra.mxu0 0
  %100 = vmatprep.subr.bf16.mxu0 0
  %101 = vmatpush2.bf16.msra.mxu0 0
  %102 = vmatprep.subr.bf16.mxu0 0
  %103 = vmatpush2.bf16.msra.mxu0 0
  %104 = vmatprep.subr.bf16.mxu0 0
  %105 = vmatpush2.bf16.msra.mxu0 0
  %106 = vmatprep.mubr.bf16.mxu0 0
  %107 = vmatmul.mubr.bf16.gmra.mxu0 %v72
  %v108 = vpop.f32.mrf.mxu0
  %v109 = vadd.f32 %v39, %v108
  %v110 = vpop.f32.mrf.mxu0
  %v111 = vpop.f32.mrf.mxu0
  %v112 = vadd.f32 %v39, %v111
  %v113 = vpop.f32.mrf.mxu0
  %114 = vdwg.mxu0
  %v115 = vld [vmem:[%s3] sm:$0xf]
  %v116 = vld [vmem:[%s3 + $0x4] sm:$0xf]
  %v117 = vunpack.c.l.bf16 %v115
  %v118 = vunpack.c.l.bf16 %v116
  %v119 = vadd.f32 %v109, %v117
  %v120 = vadd.f32 %v112, %v118
  %vm121 = vcmask 261120
  %v122 = vsel %vm121, %v119, 0.0
  %123 = vadd.xlane.f32.xlu0 %v122
  %v124 = vpop.xlane.xlu0 %123
  %v125 = vsel %vm121, %v120, 0.0
  %126 = vadd.xlane.f32.xlu0 %v125
  %v127 = vpop.xlane.xlu0 %126
  %v128 = vrcp.pop 32.0
  %v129 = vmul.f32 %v124, %v128
  %v130 = vmul.f32 %v127, %v128
  %v131 = vsub.f32 %v119, %v129
  %v132 = vsub.f32 %v120, %v130
  %v133 = vmul.f32 %v131, %v131
  %v134 = vmul.f32 %v132, %v132
  %v135 = vsel %vm121, %v133, 0.0
  %136 = vadd.xlane.f32.xlu0 %v135
  %v137 = vpop.xlane.xlu0 %136
  %v138 = vsel %vm121, %v134, 0.0
  %139 = vadd.xlane.f32.xlu0 %v138
  %v140 = vpop.xlane.xlu0 %139
  %v141 = vmul.f32 %v137, %v128
  %v142 = vmul.f32 %v140, %v128
  %v143 = vadd.f32 %v141, 1e-05
  %v144 = vadd.f32 %v142, 1e-05
  %v145 = vrsqrt.pop %v143
  %v146 = vrsqrt.pop %v144
  %v147 = vmul.f32 %v131, %v145
  %v148 = vmul.f32 %v132, %v146
  %v149 = vld [vmem:[%s4] sm:$0x1]
  %v151 = vlaneseq
  %v152 = vshrl.u32 %v151, 7
  %v153 = vsub.s32 0, %v152
  %v154 = vrot.slane %v149, %v153
  %v156 = vmul.f32 %v147, %v154
  %v157 = vmul.f32 %v148, %v154
  %v158 = vld [vmem:[%s5] sm:$0x1]
  %v160 = vlaneseq
  %v161 = vshrl.u32 %v160, 7
  %v162 = vsub.s32 0, %v161
  %v163 = vrot.slane %v158, %v162
  %v165 = vadd.f32 %v156, %v163
  %v166 = vadd.f32 %v157, %v163
  %v167 = vpack.c.bf16 %v166, %v165
  %v169 = vunpack.c.l.b16 %v167
  %v170 = vunpack.c.h.b16 %v167
  %v171 = vpack.c.b16 %v169, %v169
  %v172 = vpack.c.b16 %v170, %v170
  %vm175 = vcmask 257024
  %176 = vst.msk [vmem:[%s6] sm:$0xf] %vm175, %v171
  %177 = vst.msk [vmem:[%s6 + $0x4] sm:$0xf] %vm175, %v172
  // Predicated region
  $region26: #{roberta_classifier_forward.17} parent=0 // pred_check
    _
  $region27: #{roberta_classifier_forward.17} parent=0 // pred_check_branch
    %179 = sbr.rel (0) target = $region29
  $region28: #{roberta_classifier_forward.17} parent=0 // pred_region
    _
  $region29: #{roberta_classifier_forward.17} parent=0 // pred_fallthru
    _
  // Predicated region
  $region30: #{roberta_classifier_forward.17} parent=0 // pred_check
    _
  $region31: #{roberta_classifier_forward.17} parent=0 // pred_check_branch
    %181 = sbr.rel (0) target = $region33
  $region32: #{roberta_classifier_forward.17} parent=0 // pred_region
    _
  $region33: #{roberta_classifier_forward.17} parent=0 // pred_fallthru
    _

// kernel: roberta_classifier_forward.23
$region0: #{roberta_classifier_forward.23}
  #allocation0 [shape = 'u32[]', space=smem, size = 0x4, offset = 0x4, fixed_abs, tag = 'smem constant byte address 0x4 - core index']
  #allocation1 [shape = 'u32[144,128]{1,0:T(1,128)}', space=vmem, size = 0x12000, scoped, tag = 'internal scratch']
  %s0 = inlined_call_operand.vmem [shape: bf16[2,32], index: 0, kind: input, shape index: {}]
  %s1 = inlined_call_operand.vmem [shape: bf16[32,32], index: 1, kind: input, shape index: {}]
  %s2 = inlined_call_operand.vmem [shape: f32[1,32], index: 2, kind: input, shape index: {}]
  %s3 = inlined_call_operand.vmem [shape: bf16[32,2], index: 3, kind: input, shape index: {}]
  %s4 = inlined_call_operand.vmem [shape: f32[1,2], index: 4, kind: input, shape index: {}]
  %s5 = inlined_call_operand.hbm [shape: f32[2,2], index: 5, kind: output, shape index: {}]
  %s6 = sld [smem:[#allocation0]]
  $region30: #{roberta_classifier_forward.23} parent=0
    _
  %s8 = ssub.s32 1, %s6
  %s9 = scalar_select 0, %s8, %s6
  $region1: #{roberta_classifier_forward.23} parent=0
    #allocation2 [shape = 'u8[1024]{0}', space=vmem, size = 0x400, scoped, tag = 'output window, operand 0, single buffered']
    #allocation3 [shape = 's32[1]{0}', space=sflag, size = 0x4, scoped, tag = 'scoped memory for roberta_classifier_forward.23']
    %10 = vsyncpa [#allocation3], 0
    // Predicated region
    $region2: #{roberta_classifier_forward.23} parent=1 // pred_check
      _
    $region3: #{roberta_classifier_forward.23} parent=1 // pred_check_branch
      %12 = sbr.rel (0) target = $region5
    $region4: #{roberta_classifier_forward.23} parent=1 // pred_region
      _
    $region5: #{roberta_classifier_forward.23} parent=1 // pred_fallthru
      _
    // Predicated region
    $region6: #{roberta_classifier_forward.23} parent=1 // pred_check
      _
    $region7: #{roberta_classifier_forward.23} parent=1 // pred_check_branch
      %14 = sbr.rel (0) target = $region9
    $region8: #{roberta_classifier_forward.23} parent=1 // pred_region
      _
    $region9: #{roberta_classifier_forward.23} parent=1 // pred_fallthru
      _
    // Predicated region
    $region10: #{roberta_classifier_forward.23} parent=1 // pred_check
      _
    $region11: #{roberta_classifier_forward.23} parent=1 // pred_check_branch
      %16 = sbr.rel (0) target = $region13
    $region12: #{roberta_classifier_forward.23} parent=1 // pred_region
      _
    $region13: #{roberta_classifier_forward.23} parent=1 // pred_fallthru
      _
    // Predicated region
    $region14: #{roberta_classifier_forward.23} parent=1 // pred_check
      _
    $region15: #{roberta_classifier_forward.23} parent=1 // pred_check_branch
      %18 = sbr.rel (0) target = $region17
    $region16: #{roberta_classifier_forward.23} parent=1 // pred_region
      _
    $region17: #{roberta_classifier_forward.23} parent=1 // pred_fallthru
      _
    // Predicated region
    $region18: #{roberta_classifier_forward.23} parent=1 // pred_check
      _
    $region19: #{roberta_classifier_forward.23} parent=1 // pred_check_branch
      %20 = sbr.rel (0) target = $region21
    $region20: #{roberta_classifier_forward.23} parent=1 // pred_region
      _
    $region21: #{roberta_classifier_forward.23} parent=1 // pred_fallthru
      _
    %v22 = vld [vmem:[%s0] sm:$0x1]
    %v23 = vld [vmem:[%s1] sm:$0xf]
    %v24 = vld [vmem:[%s1 + $0x4] sm:$0xf]
    %v25 = vld [vmem:[%s1 + $0x8] sm:$0xf]
    %v26 = vld [vmem:[%s1 + $0xc] sm:$0xf]
    %v27 = vld [vmem:[%s2] sm:$0x1]
    %v29 = vlaneseq
    %v30 = vshrl.u32 %v29, 7
    %v31 = vsub.s32 0, %v30
    %v32 = vrot.slane %v27, %v31
    %v38 = vunpack.c.l.b16 %v23
    %v39 = vunpack.c.l.b16 %v24
    %v40 = vunpack.c.l.b16 %v25
    %v41 = vunpack.c.l.b16 %v26
    %v42 = vpack.c.b16 %v39, %v38
    %v43 = vpack.c.b16 %v41, %v40
    %vm46 = vcmask 261120
    %v48 = vsel %vm46, %v22, 0
    %50 = vmatprep.subr.bf16.mxu0 0
    %51 = vmatpush1.bf16.msra.mxu0 0
    %52 = vmatprep.subr.bf16.mxu0 0
    %53 = vmatpush1.bf16.msra.mxu0 0
    %54 = vmatprep.subr.bf16.mxu0 0
    %55 = vmatpush1.bf16.msra.mxu0 0
    %56 = vmatprep.subr.bf16.mxu0 0
    %57 = vmatpush1.bf16.msra.mxu0 0
    %58 = vmatprep.subr.bf16.mxu0 0
    %59 = vmatpush1.bf16.msra.mxu0 0
    %60 = vmatprep.subr.bf16.mxu0 0
    %61 = vmatpush1.bf16.msra.mxu0 0
    %62 = vmatprep.subr.bf16.mxu0 0
    %63 = vmatpush1.bf16.msra.mxu0 %v43
    %64 = vmatprep.subr.bf16.mxu0 0
    %65 = vmatpush1.bf16.msra.mxu0 %v42
    %66 = vmatprep.subr.bf16.mxu0 0
    %67 = vmatpush2.bf16.msra.mxu0 0
    %68 = vmatprep.subr.bf16.mxu0 0
    %69 = vmatpush2.bf16.msra.mxu0 0
    %70 = vmatprep.subr.bf16.mxu0 0
    %71 = vmatpush2.bf16.msra.mxu0 0
    %72 = vmatprep.subr.bf16.mxu0 0
    %73 = vmatpush2.bf16.msra.mxu0 0
    %74 = vmatprep.subr.bf16.mxu0 0
    %75 = vmatpush2.bf16.msra.mxu0 0
    %76 = vmatprep.subr.bf16.mxu0 0
    %77 = vmatpush2.bf16.msra.mxu0 0
    %78 = vmatprep.subr.bf16.mxu0 0
    %79 = vmatpush2.bf16.msra.mxu0 0
    %80 = vmatprep.subr.bf16.mxu0 0
    %81 = vmatpush2.bf16.msra.mxu0 0
    %82 = vmatprep.mubr.bf16.mxu0 0
    %83 = vmatmul.mubr.bf16.gmra.mxu0 %v48
    %v84 = vpop.f32.mrf.mxu0
    %v85 = vadd.f32 %v32, %v84
    %v86 = vpop.f32.mrf.mxu0
    %v87 = vpop.f32.mrf.mxu0
    %v88 = vpop.f32.mrf.mxu0
    %89 = vdwg.mxu0
    %v90 = vtanh.pop %v85
    %v91 = vpack.c.bf16 %v90, %v90
    %v92 = vld [vmem:[%s3] sm:$0xf]
    %v93 = vld [vmem:[%s3 + $0x4] sm:$0xf]
    %v94 = vld [vmem:[%s3 + $0x8] sm:$0xf]
    %v95 = vld [vmem:[%s3 + $0xc] sm:$0xf]
    %v96 = vld [vmem:[%s4] sm:$0x1]
    %v98 = vlaneseq
    %v99 = vshrl.u32 %v98, 7
    %v100 = vsub.s32 0, %v99
    %v101 = vrot.slane %v96, %v100
    %v107 = vunpack.c.l.b16 %v92
    %v108 = vunpack.c.l.b16 %v93
    %v109 = vunpack.c.l.b16 %v94
    %v110 = vunpack.c.l.b16 %v95
    %v111 = vpack.c.b16 %v108, %v107
    %v112 = vpack.c.b16 %v110, %v109
    %v116 = vsel %vm46, %v91, 0
    %118 = vmatprep.subr.bf16.mxu0 0
    %119 = vmatpush1.bf16.msra.mxu0 0
    %120 = vmatprep.subr.bf16.mxu0 0
    %121 = vmatpush1.bf16.msra.mxu0 0
    %122 = vmatprep.subr.bf16.mxu0 0
    %123 = vmatpush1.bf16.msra.mxu0 0
    %124 = vmatprep.subr.bf16.mxu0 0
    %125 = vmatpush1.bf16.msra.mxu0 0
    %126 = vmatprep.subr.bf16.mxu0 0
    %127 = vmatpush1.bf16.msra.mxu0 0
    %128 = vmatprep.subr.bf16.mxu0 0
    %129 = vmatpush1.bf16.msra.mxu0 0
    %130 = vmatprep.subr.bf16.mxu0 0
    %131 = vmatpush1.bf16.msra.mxu0 %v112
    %132 = vmatprep.subr.bf16.mxu0 0
    %133 = vmatpush1.bf16.msra.mxu0 %v111
    %134 = vmatprep.subr.bf16.mxu0 0
    %135 = vmatpush2.bf16.msra.mxu0 0
    %136 = vmatprep.subr.bf16.mxu0 0
    %137 = vmatpush2.bf16.msra.mxu0 0
    %138 = vmatprep.subr.bf16.mxu0 0
    %139 = vmatpush2.bf16.msra.mxu0 0
    %140 = vmatprep.subr.bf16.mxu0 0
    %141 = vmatpush2.bf16.msra.mxu0 0
    %142 = vmatprep.subr.bf16.mxu0 0
    %143 = vmatpush2.bf16.msra.mxu0 0
    %144 = vmatprep.subr.bf16.mxu0 0
    %145 = vmatpush2.bf16.msra.mxu0 0
    %146 = vmatprep.subr.bf16.mxu0 0
    %147 = vmatpush2.bf16.msra.mxu0 0
    %148 = vmatprep.subr.bf16.mxu0 0
    %149 = vmatpush2.bf16.msra.mxu0 0
    %150 = vmatprep.mubr.bf16.mxu0 0
    %151 = vmatmul.mubr.bf16.gmra.mxu0 %v116
    %v152 = vpop.f32.mrf.mxu0
    %v153 = vadd.f32 %v101, %v152
    %v154 = vpop.f32.mrf.mxu0
    %v155 = vpop.f32.mrf.mxu0
    %v156 = vpop.f32.mrf.mxu0
    %157 = vdwg.mxu0
    %vm158 = vcmask 9216
    %159 = vst.msk [vmem:[#allocation2] sm:$0x3] %vm158, %v153
    // Predicated region
    $region22: #{roberta_classifier_forward.23} parent=1 // pred_check
      _
    $region23: #{roberta_classifier_forward.23} parent=1 // pred_check_branch
      %161 = sbr.rel (0) target = $region25
    $region24: #{roberta_classifier_forward.23} parent=1 // pred_region
      %s163 = ssub.s32 32, 32
      %164 = vsyncadd [#allocation3], %s163
      %s166 = sshll.u32 [#allocation2], 4
      %s167 = int_to_ptr.vmem [resolvable:$true] %s166
      %169 = dma.vmem_to_hbm [thread:$0]  %s167, 32, %s5, [#allocation3]
    $region25: #{roberta_classifier_forward.23} parent=1 // pred_fallthru
      _
    // Predicated region
    $region26: #{roberta_classifier_forward.23} parent=1 // pred_check
      _
    $region27: #{roberta_classifier_forward.23} parent=1 // pred_check_branch
      %171 = sbr.rel (0) target = $region29
    $region28: #{roberta_classifier_forward.23} parent=1 // pred_region
      %172 = dma.done [#allocation3], 32
    $region29: #{roberta_classifier_forward.23} parent=1 // pred_fallthru
      _
    %173 = vsyncpa [#allocation3], 1

</llo_original>
